<compile_context>
chip_gen: v6e
topology: v6e:2x2x1
jax: 0.10.0
libtpu: 0.0.40
codegen_flags: <defaults>
</compile_context>

<pallas_src>
import functools

import numpy as np
import jax
import jax.numpy as jnp
from jax import lax
from jax.experimental import pallas as pl
from jax.experimental.pallas import tpu as pltpu


# ---------------------------------------------------------------------------
# Fused Pallas kernel (one image per grid step)
# ---------------------------------------------------------------------------
#
# In-kernel activation layout: (H rows, W*C lanes), zero-padded to 128 lanes.
#   x     : (32, 128)  lanes = w*3  + c_in   (96 valid)
#   a1    : (16, 128)  lanes = wp1*6 + c1    (84 valid, rows 0..13 valid)
#   a2    : ( 8, 128)  lanes = wp2*16 + c2   (80 valid, rows 0..4  valid)
#
# selN picks, for every row offset off = p + kh in [0, 6), the strided source
# rows (2*i + off) of the activation, so each conv+pool becomes
#   relu( max_par( max_p( [rows|kh lane-concat] @ T ) ) + shift )
# with T the width-Toeplitz weight slab whose 256 columns are the two pool
# column-parity groups (128 lanes each).

def lenet5_kernel(x_ref, sel1_ref, sel2_ref, t1_ref, b1_ref, t2_ref, b2_ref,
                  wfc_ref, bfc_ref, wfc1_ref, bfc1_ref, wfc2_ref, bfc2_ref,
                  o_ref):
    f32, bf16 = jnp.float32, jnp.bfloat16

    def conv_pool(src_sel, t_ref, b_ref, grp):
        # src_sel row block `off` (size grp) holds activation rows (2*i + off).
        def half(p):  # p = output-row parity inside the 2x2 pool window
            lhs = jnp.concatenate(
                [src_sel[(p + kh) * grp:(p + kh + 1) * grp, :]
                 for kh in range(5)], axis=1)                 # (grp, 640) bf16
            return jnp.dot(lhs, t_ref[...], preferred_element_type=f32)
        v = jnp.maximum(half(0), half(1))                     # pool over rows
        v = jnp.maximum(v[:, :128], v[:, 128:])               # pool over cols
        return jnp.maximum(v + b_ref[...], 0.0).astype(bf16)  # BN shift + ReLU

    x = x_ref[0]                                                       # (32,128)

    # layer1: Conv(3->6,k5) + BN + ReLU + MaxPool(2,2)
    xsel = jnp.dot(sel1_ref[...], x, preferred_element_type=f32).astype(bf16)
    a1 = conv_pool(xsel, t1_ref, b1_ref, 16)                           # (16,128)

    # layer2: Conv(6->16,k5) + BN + ReLU + MaxPool(2,2)
    a1sel = jnp.dot(sel2_ref[...], a1, preferred_element_type=f32).astype(bf16)
    a2 = conv_pool(a1sel, t2_ref, b2_ref, 8)                           # (8,128)

    # MLP head: fc(400->120) + ReLU + fc1(120->84) + ReLU + fc2(84->nc)
    flat = jnp.concatenate([a2[r:r + 1, :] for r in range(5)], axis=1)  # (1,640)
    h = jnp.dot(flat, wfc_ref[...], preferred_element_type=f32)
    h = jnp.maximum(h + bfc_ref[...], 0.0)
    h = jnp.dot(h.astype(bf16), wfc1_ref[...], preferred_element_type=f32)
    h = jnp.maximum(h + bfc1_ref[...], 0.0)
    h = jnp.dot(h.astype(bf16), wfc2_ref[...], preferred_element_type=f32)
    o_ref[0] = h + bfc2_ref[...]


# ---------------------------------------------------------------------------
# One-time parameter packing (outside jit)
# ---------------------------------------------------------------------------

def pack_params(params, num_classes, eps=1e-5):
    assert num_classes <= 128
    p = {k: np.asarray(v, np.float32) for k, v in params.items()}

    def row_select(n_off, n_valid, grp, src_rows):
        s = np.zeros((n_off * grp, src_rows), np.float32)
        for off in range(n_off):
            for i in range(n_valid):
                s[off * grp + i, 2 * i + off] = 1.0
        return s

    def fold_bn(w, b, gamma, beta, mean, var):
        scale = gamma / np.sqrt(var + eps)
        return w * scale[:, None, None, None], (b - mean) * scale + beta

    def width_toeplitz(w_scaled, wp_out):
        cout, cin, _, _ = w_scaled.shape
        t = np.zeros((5 * 128, 256), np.float32)
        for kh in range(5):
            for par in range(2):
                for wp in range(wp_out):
                    wo = 2 * wp + par
                    col0 = par * 128 + wp * cout
                    for kw in range(5):
                        for ci in range(cin):
                            t[kh * 128 + (wo + kw) * cin + ci,
                              col0:col0 + cout] = w_scaled[:, ci, kh, kw]
        return t

    def bias_lanes(shift, wp_out):
        cout = shift.shape[0]
        b = np.zeros((1, 128), np.float32)
        for wp in range(wp_out):
            b[0, wp * cout:(wp + 1) * cout] = shift
        return b

    w1s, shift1 = fold_bn(p["w_conv1"], p["b_conv1"], p["gamma1"], p["beta1"],
                          p["mean1"], p["var1"])
    w2s, shift2 = fold_bn(p["w_conv2"], p["b_conv2"], p["gamma2"], p["beta2"],
                          p["mean2"], p["var2"])

    # fc rows permuted from PyTorch's (C, H, W) flatten order to the kernel's
    # (hp2-row-block, wp2*16 + c2) layout.
    wfc = np.zeros((5 * 128, 128), np.float32)
    for hp in range(5):
        for wp in range(5):
            for c in range(16):
                wfc[hp * 128 + wp * 16 + c, :120] = p["w_fc"][c * 25 + hp * 5 + wp]
    bfc = np.zeros((1, 128), np.float32); bfc[0, :120] = p["b_fc"]
    wfc1 = np.zeros((128, 128), np.float32); wfc1[:120, :84] = p["w_fc1"]
    bfc1 = np.zeros((1, 128), np.float32); bfc1[0, :84] = p["b_fc1"]
    wfc2 = np.zeros((128, 128), np.float32); wfc2[:84, :num_classes] = p["w_fc2"]
    bfc2 = np.zeros((1, 128), np.float32); bfc2[0, :num_classes] = p["b_fc2"]

    bf16, f32 = jnp.bfloat16, jnp.float32
    return {
        "sel1": jnp.asarray(row_select(6, 14, 16, 32), bf16),   # (96, 32)
        "sel2": jnp.asarray(row_select(6, 5, 8, 16), bf16),     # (48, 16)
        "t1": jnp.asarray(width_toeplitz(w1s, 14), bf16),       # (640, 256)
        "b1": jnp.asarray(bias_lanes(shift1, 14), f32),         # (1, 128)
        "t2": jnp.asarray(width_toeplitz(w2s, 5), bf16),        # (640, 256)
        "b2": jnp.asarray(bias_lanes(shift2, 5), f32),          # (1, 128)
        "wfc": jnp.asarray(wfc, bf16), "bfc": jnp.asarray(bfc, f32),
        "wfc1": jnp.asarray(wfc1, bf16), "bfc1": jnp.asarray(bfc1, f32),
        "wfc2": jnp.asarray(wfc2, bf16), "bfc2": jnp.asarray(bfc2, f32),
    }


# ---------------------------------------------------------------------------
# Forward wrapper (jitted): one pallas_call, batch = "parallel" grid axis
# ---------------------------------------------------------------------------

def lenet5_forward(x_nchw, packed, num_classes):
    N, C, H, W = x_nchw.shape
    assert (C, H, W) == (3, 32, 32)

    # Only per-forward relayout: NCHW -> (N, H, W*C) lanes, pad to 128, bf16.
    x = jnp.transpose(x_nchw, (0, 2, 3, 1)).reshape(N, 32, 96)
    x = jnp.pad(x, ((0, 0), (0, 0), (0, 32))).astype(jnp.bfloat16)

    order = ("sel1", "sel2", "t1", "b1", "t2", "b2",
             "wfc", "bfc", "wfc1", "bfc1", "wfc2", "bfc2")
    consts = [packed[k] for k in order]

    def const_spec(a):
        nd = a.ndim
        return pl.BlockSpec(a.shape, lambda n, _nd=nd: (0,) * _nd)

    out = pl.pallas_call(
        lenet5_kernel,
        out_shape=jax.ShapeDtypeStruct((N, 1, 128), jnp.float32),
        grid=(N,),
        in_specs=[pl.BlockSpec((1, 32, 128), lambda n: (n, 0, 0))]
                 + [const_spec(a) for a in consts],
        out_specs=pl.BlockSpec((1, 1, 128), lambda n: (n, 0, 0)),
        compiler_params=pltpu.CompilerParams(
            dimension_semantics=("parallel",)),
    )(x, *consts)
    return out[:, 0, :num_classes]


# ---------------------------------------------------------------------------
# Pure-JAX reference (PyTorch semantics, eval-mode BN) for self-check
# ---------------------------------------------------------------------------

def lenet5_reference(x, p, eps=1e-5):
    def conv(h, w, b):
        return lax.conv_general_dilated(
            h, w, (1, 1), "VALID",
            dimension_numbers=("NCHW", "OIHW", "NCHW")) + b[None, :, None, None]

    def bn(h, g, b, m, v):
        return (h - m[None, :, None, None]) / jnp.sqrt(
            v[None, :, None, None] + eps) * g[None, :, None, None] + b[None, :, None, None]

    def pool(h):
        return jnp.max(jnp.stack([h[:, :, 0::2, 0::2], h[:, :, 0::2, 1::2],
                                  h[:, :, 1::2, 0::2], h[:, :, 1::2, 1::2]]), axis=0)

    h = pool(jax.nn.relu(bn(conv(x, p["w_conv1"], p["b_conv1"]),
                            p["gamma1"], p["beta1"], p["mean1"], p["var1"])))
    h = pool(jax.nn.relu(bn(conv(h, p["w_conv2"], p["b_conv2"]),
                            p["gamma2"], p["beta2"], p["mean2"], p["var2"])))
    h = h.reshape(h.shape[0], -1)
    h = jax.nn.relu(h @ p["w_fc"] + p["b_fc"])
    h = jax.nn.relu(h @ p["w_fc1"] + p["b_fc1"])
    return h @ p["w_fc2"] + p["b_fc2"]


# ---------------------------------------------------------------------------
# Deterministic parameter init (PyTorch-convention layouts)
# ---------------------------------------------------------------------------

def init_params(key, num_classes):
    ks = jax.random.split(key, 12)
    f32 = jnp.float32
    return {
        "w_conv1": 0.1 * jax.random.normal(ks[0], (6, 3, 5, 5), f32),
        "b_conv1": 0.1 * jax.random.normal(ks[1], (6,), f32),
        "gamma1": 1.0 + 0.1 * jax.random.normal(ks[2], (6,), f32),
        "beta1": 0.1 * jax.random.normal(ks[3], (6,), f32),
        "mean1": jnp.zeros((6,), f32), "var1": jnp.ones((6,), f32),
        "w_conv2": 0.1 * jax.random.normal(ks[4], (16, 6, 5, 5), f32),
        "b_conv2": 0.1 * jax.random.normal(ks[5], (16,), f32),
        "gamma2": 1.0 + 0.1 * jax.random.normal(ks[6], (16,), f32),
        "beta2": 0.1 * jax.random.normal(ks[7], (16,), f32),
        "mean2": jnp.zeros((16,), f32), "var2": jnp.ones((16,), f32),
        "w_fc": 0.05 * jax.random.normal(ks[8], (400, 120), f32),
        "b_fc": 0.05 * jax.random.normal(ks[9], (120,), f32),
        "w_fc1": 0.05 * jax.random.normal(ks[10], (120, 84), f32),
        "b_fc1": jnp.zeros((84,), f32),
        "w_fc2": 0.05 * jax.random.normal(ks[11], (84, num_classes), f32),
        "b_fc2": jnp.zeros((num_classes,), f32),
    }


if __name__ == "__main__":
    num_classes = 10
    batch = 2

    key = jax.random.PRNGKey(0)
    k_x, k_p = jax.random.split(key)
    # LeNet5's fc(400, ...) implies 32x32 RGB inputs.
    x = jax.random.normal(k_x, (batch, 3, 32, 32), jnp.float32)
    params = init_params(k_p, num_classes)

    packed = pack_params(params, num_classes)          # one-time, outside jit
    fwd = jax.jit(functools.partial(lenet5_forward, num_classes=num_classes))

    logits = fwd(x, packed)
    jax.block_until_ready(logits)

    assert logits.shape == (batch, num_classes)
    assert bool(jnp.all(jnp.isfinite(logits)))

    ref = jax.jit(lenet5_reference)(x, params)
    max_err = float(jnp.max(jnp.abs(logits - ref)))
    assert max_err < 0.3, f"kernel vs reference mismatch: max abs err = {max_err}"

    print("KERNEL_OK")
</pallas_src>

<mosaic_0001>
module attributes {stable_mosaic.version = 11 : i64} {
  func.func @lenet5_kernel(%arg0: i32, %arg1: memref<1x32x128xbf16, #tpu.memory_space<vmem>>, %arg2: memref<96x32xbf16, #tpu.memory_space<vmem>>, %arg3: memref<48x16xbf16, #tpu.memory_space<vmem>>, %arg4: memref<640x256xbf16, #tpu.memory_space<vmem>>, %arg5: memref<1x128xf32, #tpu.memory_space<vmem>>, %arg6: memref<640x256xbf16, #tpu.memory_space<vmem>>, %arg7: memref<1x128xf32, #tpu.memory_space<vmem>>, %arg8: memref<640x128xbf16, #tpu.memory_space<vmem>>, %arg9: memref<1x128xf32, #tpu.memory_space<vmem>>, %arg10: memref<128x128xbf16, #tpu.memory_space<vmem>>, %arg11: memref<1x128xf32, #tpu.memory_space<vmem>>, %arg12: memref<128x128xbf16, #tpu.memory_space<vmem>>, %arg13: memref<1x128xf32, #tpu.memory_space<vmem>>, %arg14: memref<1x1x128xf32, #tpu.memory_space<vmem>>) attributes {dimension_semantics = [#tpu.dimension_semantics<parallel>], iteration_bounds = array<i64: 2>, scalar_prefetch = 0 : i64, scratch_operands = 0 : i64, tpu.core_type = #tpu.core_type<tc>, window_params = [{transform_indices = @transform_0, window_bounds = array<i64: 1, 32, 128>}, {pipeline_mode = #tpu.pipeline_mode<synchronous>, transform_indices = @transform_1, window_bounds = array<i64: 96, 32>}, {pipeline_mode = #tpu.pipeline_mode<synchronous>, transform_indices = @transform_2, window_bounds = array<i64: 48, 16>}, {pipeline_mode = #tpu.pipeline_mode<synchronous>, transform_indices = @transform_3, window_bounds = array<i64: 640, 256>}, {pipeline_mode = #tpu.pipeline_mode<synchronous>, transform_indices = @transform_4, window_bounds = array<i64: 1, 128>}, {pipeline_mode = #tpu.pipeline_mode<synchronous>, transform_indices = @transform_5, window_bounds = array<i64: 640, 256>}, {pipeline_mode = #tpu.pipeline_mode<synchronous>, transform_indices = @transform_6, window_bounds = array<i64: 1, 128>}, {pipeline_mode = #tpu.pipeline_mode<synchronous>, transform_indices = @transform_7, window_bounds = array<i64: 640, 128>}, {pipeline_mode = #tpu.pipeline_mode<synchronous>, transform_indices = @transform_8, window_bounds = array<i64: 1, 128>}, {pipeline_mode = #tpu.pipeline_mode<synchronous>, transform_indices = @transform_9, window_bounds = array<i64: 128, 128>}, {pipeline_mode = #tpu.pipeline_mode<synchronous>, transform_indices = @transform_10, window_bounds = array<i64: 1, 128>}, {pipeline_mode = #tpu.pipeline_mode<synchronous>, transform_indices = @transform_11, window_bounds = array<i64: 128, 128>}, {pipeline_mode = #tpu.pipeline_mode<synchronous>, transform_indices = @transform_12, window_bounds = array<i64: 1, 128>}, {transform_indices = @transform_13, window_bounds = array<i64: 1, 1, 128>}]} {
    %c0 = arith.constant 0 : index
    %c0_0 = arith.constant 0 : index
    %c0_1 = arith.constant 0 : index
    %0 = vector.load %arg1[%c0, %c0_0, %c0_1] : memref<1x32x128xbf16, #tpu.memory_space<vmem>>, vector<1x32x128xbf16>
    %1 = vector.shape_cast %0 : vector<1x32x128xbf16> to vector<32x128xbf16>
    %c0_2 = arith.constant 0 : index
    %c0_3 = arith.constant 0 : index
    %2 = vector.load %arg2[%c0_2, %c0_3] : memref<96x32xbf16, #tpu.memory_space<vmem>>, vector<96x32xbf16>
    %cst = arith.constant dense<0.000000e+00> : vector<96x128xf32>
    %3 = tpu.matmul %2, %1, %cst {dimension_numbers = #tpu.dot_dimension_numbers<[1], [0], [0], [1], [0, 0, 1, 1], [], []>} : vector<96x32xbf16>, vector<32x128xbf16>, vector<96x128xf32> -> vector<96x128xf32>
    %4 = arith.truncf %3 : vector<96x128xf32> to vector<96x128xbf16>
    %5 = vector.extract_strided_slice %4 {offsets = [0, 0], sizes = [16, 128], strides = [1, 1]} : vector<96x128xbf16> to vector<16x128xbf16>
    %6 = vector.extract_strided_slice %4 {offsets = [16, 0], sizes = [16, 128], strides = [1, 1]} : vector<96x128xbf16> to vector<16x128xbf16>
    %7 = vector.extract_strided_slice %4 {offsets = [32, 0], sizes = [16, 128], strides = [1, 1]} : vector<96x128xbf16> to vector<16x128xbf16>
    %8 = vector.extract_strided_slice %4 {offsets = [48, 0], sizes = [16, 128], strides = [1, 1]} : vector<96x128xbf16> to vector<16x128xbf16>
    %9 = vector.extract_strided_slice %4 {offsets = [64, 0], sizes = [16, 128], strides = [1, 1]} : vector<96x128xbf16> to vector<16x128xbf16>
    %10 = tpu.concatenate %5, %6, %7, %8, %9 in 1 : vector<16x128xbf16>, vector<16x128xbf16>, vector<16x128xbf16>, vector<16x128xbf16>, vector<16x128xbf16> -> vector<16x640xbf16>
    %c0_4 = arith.constant 0 : index
    %c0_5 = arith.constant 0 : index
    %11 = vector.load %arg4[%c0_4, %c0_5] : memref<640x256xbf16, #tpu.memory_space<vmem>>, vector<640x256xbf16>
    %cst_6 = arith.constant dense<0.000000e+00> : vector<16x256xf32>
    %12 = tpu.matmul %10, %11, %cst_6 {dimension_numbers = #tpu.dot_dimension_numbers<[1], [0], [0], [1], [0, 0, 1, 1], [], []>} : vector<16x640xbf16>, vector<640x256xbf16>, vector<16x256xf32> -> vector<16x256xf32>
    %13 = vector.extract_strided_slice %4 {offsets = [16, 0], sizes = [16, 128], strides = [1, 1]} : vector<96x128xbf16> to vector<16x128xbf16>
    %14 = vector.extract_strided_slice %4 {offsets = [32, 0], sizes = [16, 128], strides = [1, 1]} : vector<96x128xbf16> to vector<16x128xbf16>
    %15 = vector.extract_strided_slice %4 {offsets = [48, 0], sizes = [16, 128], strides = [1, 1]} : vector<96x128xbf16> to vector<16x128xbf16>
    %16 = vector.extract_strided_slice %4 {offsets = [64, 0], sizes = [16, 128], strides = [1, 1]} : vector<96x128xbf16> to vector<16x128xbf16>
    %17 = vector.extract_strided_slice %4 {offsets = [80, 0], sizes = [16, 128], strides = [1, 1]} : vector<96x128xbf16> to vector<16x128xbf16>
    %18 = tpu.concatenate %13, %14, %15, %16, %17 in 1 : vector<16x128xbf16>, vector<16x128xbf16>, vector<16x128xbf16>, vector<16x128xbf16>, vector<16x128xbf16> -> vector<16x640xbf16>
    %c0_7 = arith.constant 0 : index
    %c0_8 = arith.constant 0 : index
    %19 = vector.load %arg4[%c0_7, %c0_8] : memref<640x256xbf16, #tpu.memory_space<vmem>>, vector<640x256xbf16>
    %cst_9 = arith.constant dense<0.000000e+00> : vector<16x256xf32>
    %20 = tpu.matmul %18, %19, %cst_9 {dimension_numbers = #tpu.dot_dimension_numbers<[1], [0], [0], [1], [0, 0, 1, 1], [], []>} : vector<16x640xbf16>, vector<640x256xbf16>, vector<16x256xf32> -> vector<16x256xf32>
    %21 = arith.maximumf %12, %20 : vector<16x256xf32>
    %22 = vector.extract_strided_slice %21 {offsets = [0, 0], sizes = [16, 128], strides = [1, 1]} : vector<16x256xf32> to vector<16x128xf32>
    %23 = vector.extract_strided_slice %21 {offsets = [0, 128], sizes = [16, 128], strides = [1, 1]} : vector<16x256xf32> to vector<16x128xf32>
    %24 = arith.maximumf %22, %23 : vector<16x128xf32>
    %c0_10 = arith.constant 0 : index
    %c0_11 = arith.constant 0 : index
    %25 = vector.load %arg5[%c0_10, %c0_11] : memref<1x128xf32, #tpu.memory_space<vmem>>, vector<1x128xf32>
    %26 = vector.broadcast %25 : vector<1x128xf32> to vector<16x128xf32>
    %27 = arith.addf %24, %26 : vector<16x128xf32>
    %cst_12 = arith.constant 0.000000e+00 : f32
    %28 = vector.broadcast %cst_12 : f32 to vector<16x128xf32>
    %29 = arith.maximumf %27, %28 : vector<16x128xf32>
    %30 = arith.truncf %29 : vector<16x128xf32> to vector<16x128xbf16>
    %c0_13 = arith.constant 0 : index
    %c0_14 = arith.constant 0 : index
    %31 = vector.load %arg3[%c0_13, %c0_14] : memref<48x16xbf16, #tpu.memory_space<vmem>>, vector<48x16xbf16>
    %cst_15 = arith.constant dense<0.000000e+00> : vector<48x128xf32>
    %32 = tpu.matmul %31, %30, %cst_15 {dimension_numbers = #tpu.dot_dimension_numbers<[1], [0], [0], [1], [0, 0, 1, 1], [], []>} : vector<48x16xbf16>, vector<16x128xbf16>, vector<48x128xf32> -> vector<48x128xf32>
    %33 = arith.truncf %32 : vector<48x128xf32> to vector<48x128xbf16>
    %34 = vector.extract_strided_slice %33 {offsets = [0, 0], sizes = [8, 128], strides = [1, 1]} : vector<48x128xbf16> to vector<8x128xbf16>
    %35 = vector.extract_strided_slice %33 {offsets = [8, 0], sizes = [8, 128], strides = [1, 1]} : vector<48x128xbf16> to vector<8x128xbf16>
    %36 = vector.extract_strided_slice %33 {offsets = [16, 0], sizes = [8, 128], strides = [1, 1]} : vector<48x128xbf16> to vector<8x128xbf16>
    %37 = vector.extract_strided_slice %33 {offsets = [24, 0], sizes = [8, 128], strides = [1, 1]} : vector<48x128xbf16> to vector<8x128xbf16>
    %38 = vector.extract_strided_slice %33 {offsets = [32, 0], sizes = [8, 128], strides = [1, 1]} : vector<48x128xbf16> to vector<8x128xbf16>
    %39 = tpu.concatenate %34, %35, %36, %37, %38 in 1 : vector<8x128xbf16>, vector<8x128xbf16>, vector<8x128xbf16>, vector<8x128xbf16>, vector<8x128xbf16> -> vector<8x640xbf16>
    %c0_16 = arith.constant 0 : index
    %c0_17 = arith.constant 0 : index
    %40 = vector.load %arg6[%c0_16, %c0_17] : memref<640x256xbf16, #tpu.memory_space<vmem>>, vector<640x256xbf16>
    %cst_18 = arith.constant dense<0.000000e+00> : vector<8x256xf32>
    %41 = tpu.matmul %39, %40, %cst_18 {dimension_numbers = #tpu.dot_dimension_numbers<[1], [0], [0], [1], [0, 0, 1, 1], [], []>} : vector<8x640xbf16>, vector<640x256xbf16>, vector<8x256xf32> -> vector<8x256xf32>
    %42 = vector.extract_strided_slice %33 {offsets = [8, 0], sizes = [8, 128], strides = [1, 1]} : vector<48x128xbf16> to vector<8x128xbf16>
    %43 = vector.extract_strided_slice %33 {offsets = [16, 0], sizes = [8, 128], strides = [1, 1]} : vector<48x128xbf16> to vector<8x128xbf16>
    %44 = vector.extract_strided_slice %33 {offsets = [24, 0], sizes = [8, 128], strides = [1, 1]} : vector<48x128xbf16> to vector<8x128xbf16>
    %45 = vector.extract_strided_slice %33 {offsets = [32, 0], sizes = [8, 128], strides = [1, 1]} : vector<48x128xbf16> to vector<8x128xbf16>
    %46 = vector.extract_strided_slice %33 {offsets = [40, 0], sizes = [8, 128], strides = [1, 1]} : vector<48x128xbf16> to vector<8x128xbf16>
    %47 = tpu.concatenate %42, %43, %44, %45, %46 in 1 : vector<8x128xbf16>, vector<8x128xbf16>, vector<8x128xbf16>, vector<8x128xbf16>, vector<8x128xbf16> -> vector<8x640xbf16>
    %c0_19 = arith.constant 0 : index
    %c0_20 = arith.constant 0 : index
    %48 = vector.load %arg6[%c0_19, %c0_20] : memref<640x256xbf16, #tpu.memory_space<vmem>>, vector<640x256xbf16>
    %cst_21 = arith.constant dense<0.000000e+00> : vector<8x256xf32>
    %49 = tpu.matmul %47, %48, %cst_21 {dimension_numbers = #tpu.dot_dimension_numbers<[1], [0], [0], [1], [0, 0, 1, 1], [], []>} : vector<8x640xbf16>, vector<640x256xbf16>, vector<8x256xf32> -> vector<8x256xf32>
    %50 = arith.maximumf %41, %49 : vector<8x256xf32>
    %51 = vector.extract_strided_slice %50 {offsets = [0, 0], sizes = [8, 128], strides = [1, 1]} : vector<8x256xf32> to vector<8x128xf32>
    %52 = vector.extract_strided_slice %50 {offsets = [0, 128], sizes = [8, 128], strides = [1, 1]} : vector<8x256xf32> to vector<8x128xf32>
    %53 = arith.maximumf %51, %52 : vector<8x128xf32>
    %c0_22 = arith.constant 0 : index
    %c0_23 = arith.constant 0 : index
    %54 = vector.load %arg7[%c0_22, %c0_23] : memref<1x128xf32, #tpu.memory_space<vmem>>, vector<1x128xf32>
    %55 = vector.broadcast %54 : vector<1x128xf32> to vector<8x128xf32>
    %56 = arith.addf %53, %55 : vector<8x128xf32>
    %cst_24 = arith.constant 0.000000e+00 : f32
    %57 = vector.broadcast %cst_24 : f32 to vector<8x128xf32>
    %58 = arith.maximumf %56, %57 : vector<8x128xf32>
    %59 = arith.truncf %58 : vector<8x128xf32> to vector<8x128xbf16>
    %60 = vector.extract_strided_slice %59 {offsets = [0, 0], sizes = [1, 128], strides = [1, 1]} : vector<8x128xbf16> to vector<1x128xbf16>
    %61 = vector.extract_strided_slice %59 {offsets = [1, 0], sizes = [1, 128], strides = [1, 1]} : vector<8x128xbf16> to vector<1x128xbf16>
    %62 = vector.extract_strided_slice %59 {offsets = [2, 0], sizes = [1, 128], strides = [1, 1]} : vector<8x128xbf16> to vector<1x128xbf16>
    %63 = vector.extract_strided_slice %59 {offsets = [3, 0], sizes = [1, 128], strides = [1, 1]} : vector<8x128xbf16> to vector<1x128xbf16>
    %64 = vector.extract_strided_slice %59 {offsets = [4, 0], sizes = [1, 128], strides = [1, 1]} : vector<8x128xbf16> to vector<1x128xbf16>
    %65 = tpu.concatenate %60, %61, %62, %63, %64 in 1 : vector<1x128xbf16>, vector<1x128xbf16>, vector<1x128xbf16>, vector<1x128xbf16>, vector<1x128xbf16> -> vector<1x640xbf16>
    %c0_25 = arith.constant 0 : index
    %c0_26 = arith.constant 0 : index
    %66 = vector.load %arg8[%c0_25, %c0_26] : memref<640x128xbf16, #tpu.memory_space<vmem>>, vector<640x128xbf16>
    %cst_27 = arith.constant dense<0.000000e+00> : vector<1x128xf32>
    %67 = tpu.matmul %65, %66, %cst_27 {dimension_numbers = #tpu.dot_dimension_numbers<[1], [0], [0], [1], [0, 0, 1, 1], [], []>} : vector<1x640xbf16>, vector<640x128xbf16>, vector<1x128xf32> -> vector<1x128xf32>
    %c0_28 = arith.constant 0 : index
    %c0_29 = arith.constant 0 : index
    %68 = vector.load %arg9[%c0_28, %c0_29] : memref<1x128xf32, #tpu.memory_space<vmem>>, vector<1x128xf32>
    %69 = arith.addf %67, %68 : vector<1x128xf32>
    %cst_30 = arith.constant 0.000000e+00 : f32
    %70 = vector.broadcast %cst_30 : f32 to vector<1x128xf32>
    %71 = arith.maximumf %69, %70 : vector<1x128xf32>
    %72 = arith.truncf %71 : vector<1x128xf32> to vector<1x128xbf16>
    %c0_31 = arith.constant 0 : index
    %c0_32 = arith.constant 0 : index
    %73 = vector.load %arg10[%c0_31, %c0_32] : memref<128x128xbf16, #tpu.memory_space<vmem>>, vector<128x128xbf16>
    %cst_33 = arith.constant dense<0.000000e+00> : vector<1x128xf32>
    %74 = tpu.matmul %72, %73, %cst_33 {dimension_numbers = #tpu.dot_dimension_numbers<[1], [0], [0], [1], [0, 0, 1, 1], [], []>} : vector<1x128xbf16>, vector<128x128xbf16>, vector<1x128xf32> -> vector<1x128xf32>
    %c0_34 = arith.constant 0 : index
    %c0_35 = arith.constant 0 : index
    %75 = vector.load %arg11[%c0_34, %c0_35] : memref<1x128xf32, #tpu.memory_space<vmem>>, vector<1x128xf32>
    %76 = arith.addf %74, %75 : vector<1x128xf32>
    %cst_36 = arith.constant 0.000000e+00 : f32
    %77 = vector.broadcast %cst_36 : f32 to vector<1x128xf32>
    %78 = arith.maximumf %76, %77 : vector<1x128xf32>
    %79 = arith.truncf %78 : vector<1x128xf32> to vector<1x128xbf16>
    %c0_37 = arith.constant 0 : index
    %c0_38 = arith.constant 0 : index
    %80 = vector.load %arg12[%c0_37, %c0_38] : memref<128x128xbf16, #tpu.memory_space<vmem>>, vector<128x128xbf16>
    %cst_39 = arith.constant dense<0.000000e+00> : vector<1x128xf32>
    %81 = tpu.matmul %79, %80, %cst_39 {dimension_numbers = #tpu.dot_dimension_numbers<[1], [0], [0], [1], [0, 0, 1, 1], [], []>} : vector<1x128xbf16>, vector<128x128xbf16>, vector<1x128xf32> -> vector<1x128xf32>
    %c0_40 = arith.constant 0 : index
    %c0_41 = arith.constant 0 : index
    %82 = vector.load %arg13[%c0_40, %c0_41] : memref<1x128xf32, #tpu.memory_space<vmem>>, vector<1x128xf32>
    %83 = arith.addf %81, %82 : vector<1x128xf32>
    %c0_42 = arith.constant 0 : index
    %c0_43 = arith.constant 0 : index
    %c0_44 = arith.constant 0 : index
    %84 = vector.load %arg14[%c0_42, %c0_43, %c0_44] : memref<1x1x128xf32, #tpu.memory_space<vmem>>, vector<1x1x128xf32>
    %85 = vector.shape_cast %84 : vector<1x1x128xf32> to vector<1x128xf32>
    %86 = vector.shape_cast %83 : vector<1x128xf32> to vector<1x1x128xf32>
    tpu.vector_store %arg14[%c0_42, %c0_43, %c0_44], %86 {strides = array<i32>} : memref<1x1x128xf32, #tpu.memory_space<vmem>>, vector<1x1x128xf32>,
    return
  }
  func.func @transform_0(%arg0: i32) -> (i32, i32, i32) {
    %c0_i32 = arith.constant 0 : i32
    %c0_i32_0 = arith.constant 0 : i32
    %c0_i32_1 = arith.constant 0 : i32
    return %arg0, %c0_i32, %c0_i32_0 : i32, i32, i32
  }
  func.func @transform_1(%arg0: i32) -> (i32, i32) {
    %c0_i32 = arith.constant 0 : i32
    %c0_i32_0 = arith.constant 0 : i32
    %c0_i32_1 = arith.constant 0 : i32
    return %c0_i32, %c0_i32_0 : i32, i32
  }
  func.func @transform_2(%arg0: i32) -> (i32, i32) {
    %c0_i32 = arith.constant 0 : i32
    %c0_i32_0 = arith.constant 0 : i32
    %c0_i32_1 = arith.constant 0 : i32
    return %c0_i32, %c0_i32_0 : i32, i32
  }
  func.func @transform_3(%arg0: i32) -> (i32, i32) {
    %c0_i32 = arith.constant 0 : i32
    %c0_i32_0 = arith.constant 0 : i32
    %c0_i32_1 = arith.constant 0 : i32
    return %c0_i32, %c0_i32_0 : i32, i32
  }
  func.func @transform_4(%arg0: i32) -> (i32, i32) {
    %c0_i32 = arith.constant 0 : i32
    %c0_i32_0 = arith.constant 0 : i32
    %c0_i32_1 = arith.constant 0 : i32
    return %c0_i32, %c0_i32_0 : i32, i32
  }
  func.func @transform_5(%arg0: i32) -> (i32, i32) {
    %c0_i32 = arith.constant 0 : i32
    %c0_i32_0 = arith.constant 0 : i32
    %c0_i32_1 = arith.constant 0 : i32
    return %c0_i32, %c0_i32_0 : i32, i32
  }
  func.func @transform_6(%arg0: i32) -> (i32, i32) {
    %c0_i32 = arith.constant 0 : i32
    %c0_i32_0 = arith.constant 0 : i32
    %c0_i32_1 = arith.constant 0 : i32
    return %c0_i32, %c0_i32_0 : i32, i32
  }
  func.func @transform_7(%arg0: i32) -> (i32, i32) {
    %c0_i32 = arith.constant 0 : i32
    %c0_i32_0 = arith.constant 0 : i32
    %c0_i32_1 = arith.constant 0 : i32
    return %c0_i32, %c0_i32_0 : i32, i32
  }
  func.func @transform_8(%arg0: i32) -> (i32, i32) {
    %c0_i32 = arith.constant 0 : i32
    %c0_i32_0 = arith.constant 0 : i32
    %c0_i32_1 = arith.constant 0 : i32
    return %c0_i32, %c0_i32_0 : i32, i32
  }
  func.func @transform_9(%arg0: i32) -> (i32, i32) {
    %c0_i32 = arith.constant 0 : i32
    %c0_i32_0 = arith.constant 0 : i32
    %c0_i32_1 = arith.constant 0 : i32
    return %c0_i32, %c0_i32_0 : i32, i32
  }
  func.func @transform_10(%arg0: i32) -> (i32, i32) {
    %c0_i32 = arith.constant 0 : i32
    %c0_i32_0 = arith.constant 0 : i32
    %c0_i32_1 = arith.constant 0 : i32
    return %c0_i32, %c0_i32_0 : i32, i32
  }
  func.func @transform_11(%arg0: i32) -> (i32, i32) {
    %c0_i32 = arith.constant 0 : i32
    %c0_i32_0 = arith.constant 0 : i32
    %c0_i32_1 = arith.constant 0 : i32
    return %c0_i32, %c0_i32_0 : i32, i32
  }
  func.func @transform_12(%arg0: i32) -> (i32, i32) {
    %c0_i32 = arith.constant 0 : i32
    %c0_i32_0 = arith.constant 0 : i32
    %c0_i32_1 = arith.constant 0 : i32
    return %c0_i32, %c0_i32_0 : i32, i32
  }
  func.func @transform_13(%arg0: i32) -> (i32, i32, i32) {
    %c0_i32 = arith.constant 0 : i32
    %c0_i32_0 = arith.constant 0 : i32
    %c0_i32_1 = arith.constant 0 : i32
    return %arg0, %c0_i32, %c0_i32_0 : i32, i32, i32
  }
}

</mosaic_0001>

<llo_original>
// kernel: lenet5_forward.1
$region0: #{lenet5_forward.1}
  #allocation0 [shape = 'u32[]', space=smem, size = 0x4, offset = 0x4, fixed_abs, tag = 'smem constant byte address 0x4 - core index']
  #allocation1 [shape = 'u32[144,128]{1,0:T(1,128)}', space=vmem, size = 0x12000, scoped, tag = 'internal scratch']
  %s0 = inlined_call_operand.vmem [shape: bf16[2,32,128], index: 0, kind: input, shape index: {}]
  %s1 = inlined_call_operand.vmem [shape: bf16[96,32], index: 1, kind: input, shape index: {}]
  %s2 = inlined_call_operand.vmem [shape: bf16[48,16], index: 2, kind: input, shape index: {}]
  %s3 = inlined_call_operand.vmem [shape: bf16[640,256], index: 3, kind: input, shape index: {}]
  %s4 = inlined_call_operand.vmem [shape: f32[1,128], index: 4, kind: input, shape index: {}]
  %s5 = inlined_call_operand.hbm [shape: bf16[640,256], index: 5, kind: input, shape index: {}]
  %s6 = inlined_call_operand.hbm [shape: f32[1,128], index: 6, kind: input, shape index: {}]
  %s7 = inlined_call_operand.hbm [shape: bf16[640,128], index: 7, kind: input, shape index: {}]
  %s8 = inlined_call_operand.hbm [shape: f32[1,128], index: 8, kind: input, shape index: {}]
  %s9 = inlined_call_operand.vmem [shape: bf16[128,128], index: 9, kind: input, shape index: {}]
  %s10 = inlined_call_operand.hbm [shape: f32[1,128], index: 10, kind: input, shape index: {}]
  %s11 = inlined_call_operand.vmem [shape: bf16[128,128], index: 11, kind: input, shape index: {}]
  %s12 = inlined_call_operand.hbm [shape: f32[1,128], index: 12, kind: input, shape index: {}]
  %s13 = inlined_call_operand.hbm [shape: f32[2,1,128], index: 13, kind: output, shape index: {}]
  %s14 = sld [smem:[#allocation0]]
  $region109: #{lenet5_forward.1} parent=0
    _
  %s16 = ssub.s32 1, %s14
  %s17 = scalar_select 0, %s16, %s14
  $region1: #{lenet5_forward.1} parent=0
    #allocation2 [shape = 'u8[327680]{0}', space=vmem, size = 0x50000, scoped, tag = 'input window, operand 5, single buffered']
    #allocation3 [shape = 's32[2]{0}', space=sflag, size = 0x8, scoped, tag = 'scoped memory for lenet5_forward.1']
    #allocation4 [shape = 's32[2]{0}', space=sflag, size = 0x8, scoped, tag = 'scoped memory for lenet5_forward.1']
    #allocation5 [shape = 'u8[512]{0}', space=vmem, size = 0x400, scoped, tag = 'input window, operand 6, single buffered']
    #allocation6 [shape = 's32[1]{0}', space=sflag, size = 0x4, scoped, tag = 'scoped memory for lenet5_forward.1']
    #allocation7 [shape = 'u8[163840]{0}', space=vmem, size = 0x28000, scoped, tag = 'input window, operand 7, single buffered']
    #allocation8 [shape = 'u8[512]{0}', space=vmem, size = 0x400, scoped, tag = 'input window, operand 8, single buffered']
    #allocation9 [shape = 's32[1]{0}', space=sflag, size = 0x4, scoped, tag = 'scoped memory for lenet5_forward.1']
    #allocation10 [shape = 'u8[512]{0}', space=vmem, size = 0x400, scoped, tag = 'input window, operand 10, single buffered']
    #allocation11 [shape = 'u8[512]{0}', space=vmem, size = 0x400, scoped, tag = 'input window, operand 12, single buffered']
    #allocation12 [shape = 's32[1]{0}', space=sflag, size = 0x4, scoped, tag = 'scoped memory for lenet5_forward.1']
    #allocation13 [shape = 'u8[1024]{0}', space=vmem, size = 0x400, scoped, tag = 'output window, operand 0']
    %18 = vsyncpa [#allocation3], 0
    %19 = vsyncpa [#allocation6], 0
    %20 = vsyncpa [#allocation9], 0
    %21 = vsyncpa [#allocation12], 0
    %22 = vsyncpa [#allocation4], 0
    %s23 = scalar_lea.sflag [#allocation4], 1
    %24 = vsyncpa %s23, 0
    loop: start=0, step=1, limit=4
    $region2: #{lenet5_forward.1} parent=1 // loop_pre_header
      _
    $region3: #{lenet5_forward.1} parent=1 // loop_header
      %s26 = sphi 0, %s30
      %p27 = scmp.ge.s32.totalorder %s26, 4
      %s36 = sphi 0, %s38
      %s39 = sphi 0, %s36
      %s40 = sphi 0, %s39
      %s56 = sphi 0, %s40
      %s60 = sphi 0, %s60
      %s62 = sphi 0, %s60
      %s63 = sphi 0, %s62
      %s77 = sphi 0, %s63
      %s81 = sphi 0, %s81
      %s83 = sphi 0, %s81
      %s84 = sphi 0, %s83
      %s98 = sphi 0, %s84
      %s102 = sphi 0, %s102
      %s104 = sphi 0, %s102
      %s105 = sphi 0, %s104
      %s119 = sphi 0, %s105
      %s123 = sphi 0, %s123
      %s125 = sphi 0, %s123
      %s126 = sphi 0, %s125
      %s140 = sphi 0, %s126
      %s144 = sphi 0, %s144
      %s146 = sphi 0, %s144
      %s147 = sphi 0, %s146
      %s161 = sphi 0, %s147
      %s165 = sphi 0, %s165
      %s167 = sphi 0, %s165
      %s168 = sphi 0, %s167
      %s182 = sphi 0, %s168
      %s186 = sphi 0, %s186
      %s188 = sphi 0, %s186
      %s189 = sphi 0, %s188
      %s203 = sphi 0, %s189
      %s207 = sphi 0, %s207
      %s209 = sphi 0, %s207
      %s210 = sphi 0, %s209
      %s224 = sphi 0, %s210
      %s228 = sphi 0, %s228
      %s230 = sphi 0, %s228
      %s231 = sphi 0, %s230
      %s245 = sphi 0, %s231
      %s249 = sphi 0, %s249
      %s251 = sphi 0, %s249
      %s252 = sphi 0, %s251
      %s266 = sphi 0, %s252
      %s270 = sphi 0, %s270
      %s272 = sphi 0, %s270
      %s273 = sphi 0, %s272
      %s287 = sphi 0, %s273
      %s291 = sphi 0, %s291
      %s293 = sphi 0, %s291
      %s294 = sphi 0, %s293
      %s308 = sphi 0, %s294
      %s314 = sphi 0, %s316
      %s317 = sphi 0, %s314
      %s318 = sphi 0, %s317
      %s334 = sphi 0, %s318
    $region4: #{lenet5_forward.1} parent=1 // loop_header_branch
      %29 = sbr.rel (%p27) target = $region8
    $region5: #{lenet5_forward.1} parent=1 // loop_body
      %s31 = ssub.s32 %s26, 1
      %s32 = ssub.s32 %s26, 2
      %s33 = sadd.s32 %s26, 1
      %s34 = ssub.s32 %s26, %s33
      %p35 = scmp.eq.s32.totalorder %s34, 0
      %s37 = sadd.s32 %s36, 1
      %s38 = scalar_select %p35, %s36, %s37
      %p41 = pneg %p35
      %p42 = scmp.eq.s32.totalorder %s26, 1
      %p43 = por %p41, %p42
      %p44 = scmp.ne.s32.totalorder %s36, %s39
      %p45 = scmp.eq.s32.totalorder %s26, 0
      %p46 = por %p44, %p45
      %p47 = scmp.ne.s32.totalorder %s36, %s39
      %p48 = scmp.eq.s32.totalorder %s31, 1
      %p49 = por %p47, %p48
      %p50 = scmp.ne.s32.totalorder %s39, %s40
      %p51 = scmp.eq.s32.totalorder %s31, 0
      %p52 = por %p50, %p51
      %p53 = scmp.ne.s32.totalorder %s39, %s40
      %p54 = scmp.eq.s32.totalorder %s32, 1
      %p55 = por %p53, %p54
      %p57 = scmp.ne.s32.totalorder %s40, %s56
      %p58 = scmp.eq.s32.totalorder %s32, 0
      %p59 = por %p57, %p58
      %s61 = sadd.s32 %s60, 1
      %p64 = scmp.eq.s32.totalorder %s26, 1
      %p65 = scmp.ne.s32.totalorder %s60, %s62
      %p66 = scmp.eq.s32.totalorder %s26, 0
      %p67 = por %p65, %p66
      %p68 = scmp.ne.s32.totalorder %s60, %s62
      %p69 = scmp.eq.s32.totalorder %s31, 1
      %p70 = por %p68, %p69
      %p71 = scmp.ne.s32.totalorder %s62, %s63
      %p72 = scmp.eq.s32.totalorder %s31, 0
      %p73 = por %p71, %p72
      %p74 = scmp.ne.s32.totalorder %s62, %s63
      %p75 = scmp.eq.s32.totalorder %s32, 1
      %p76 = por %p74, %p75
      %p78 = scmp.ne.s32.totalorder %s63, %s77
      %p79 = scmp.eq.s32.totalorder %s32, 0
      %p80 = por %p78, %p79
      %s82 = sadd.s32 %s81, 1
      %p85 = scmp.eq.s32.totalorder %s26, 1
      %p86 = scmp.ne.s32.totalorder %s81, %s83
      %p87 = scmp.eq.s32.totalorder %s26, 0
      %p88 = por %p86, %p87
      %p89 = scmp.ne.s32.totalorder %s81, %s83
      %p90 = scmp.eq.s32.totalorder %s31, 1
      %p91 = por %p89, %p90
      %p92 = scmp.ne.s32.totalorder %s83, %s84
      %p93 = scmp.eq.s32.totalorder %s31, 0
      %p94 = por %p92, %p93
      %p95 = scmp.ne.s32.totalorder %s83, %s84
      %p96 = scmp.eq.s32.totalorder %s32, 1
      %p97 = por %p95, %p96
      %p99 = scmp.ne.s32.totalorder %s84, %s98
      %p100 = scmp.eq.s32.totalorder %s32, 0
      %p101 = por %p99, %p100
      %s103 = sadd.s32 %s102, 1
      %p106 = scmp.eq.s32.totalorder %s26, 1
      %p107 = scmp.ne.s32.totalorder %s102, %s104
      %p108 = scmp.eq.s32.totalorder %s26, 0
      %p109 = por %p107, %p108
      %p110 = scmp.ne.s32.totalorder %s102, %s104
      %p111 = scmp.eq.s32.totalorder %s31, 1
      %p112 = por %p110, %p111
      %p113 = scmp.ne.s32.totalorder %s104, %s105
      %p114 = scmp.eq.s32.totalorder %s31, 0
      %p115 = por %p113, %p114
      %p116 = scmp.ne.s32.totalorder %s104, %s105
      %p117 = scmp.eq.s32.totalorder %s32, 1
      %p118 = por %p116, %p117
      %p120 = scmp.ne.s32.totalorder %s105, %s119
      %p121 = scmp.eq.s32.totalorder %s32, 0
      %p122 = por %p120, %p121
      %s124 = sadd.s32 %s123, 1
      %p127 = scmp.eq.s32.totalorder %s26, 1
      %p128 = scmp.ne.s32.totalorder %s123, %s125
      %p129 = scmp.eq.s32.totalorder %s26, 0
      %p130 = por %p128, %p129
      %p131 = scmp.ne.s32.totalorder %s123, %s125
      %p132 = scmp.eq.s32.totalorder %s31, 1
      %p133 = por %p131, %p132
      %p134 = scmp.ne.s32.totalorder %s125, %s126
      %p135 = scmp.eq.s32.totalorder %s31, 0
      %p136 = por %p134, %p135
      %p137 = scmp.ne.s32.totalorder %s125, %s126
      %p138 = scmp.eq.s32.totalorder %s32, 1
      %p139 = por %p137, %p138
      %p141 = scmp.ne.s32.totalorder %s126, %s140
      %p142 = scmp.eq.s32.totalorder %s32, 0
      %p143 = por %p141, %p142
      %s145 = sadd.s32 %s144, 1
      %p148 = scmp.eq.s32.totalorder %s26, 1
      %p149 = scmp.ne.s32.totalorder %s144, %s146
      %p150 = scmp.eq.s32.totalorder %s26, 0
      %p151 = por %p149, %p150
      %p152 = scmp.ne.s32.totalorder %s144, %s146
      %p153 = scmp.eq.s32.totalorder %s31, 1
      %p154 = por %p152, %p153
      %p155 = scmp.ne.s32.totalorder %s146, %s147
      %p156 = scmp.eq.s32.totalorder %s31, 0
      %p157 = por %p155, %p156
      %p158 = scmp.ne.s32.totalorder %s146, %s147
      %p159 = scmp.eq.s32.totalorder %s32, 1
      %p160 = por %p158, %p159
      %p162 = scmp.ne.s32.totalorder %s147, %s161
      %p163 = scmp.eq.s32.totalorder %s32, 0
      %p164 = por %p162, %p163
      %s166 = sadd.s32 %s165, 1
      %p169 = scmp.eq.s32.totalorder %s26, 1
      %p170 = scmp.ne.s32.totalorder %s165, %s167
      %p171 = scmp.eq.s32.totalorder %s26, 0
      %p172 = por %p170, %p171
      %p173 = scmp.ne.s32.totalorder %s165, %s167
      %p174 = scmp.eq.s32.totalorder %s31, 1
      %p175 = por %p173, %p174
      %p176 = scmp.ne.s32.totalorder %s167, %s168
      %p177 = scmp.eq.s32.totalorder %s31, 0
      %p178 = por %p176, %p177
      %p179 = scmp.ne.s32.totalorder %s167, %s168
      %p180 = scmp.eq.s32.totalorder %s32, 1
      %p181 = por %p179, %p180
      %p183 = scmp.ne.s32.totalorder %s168, %s182
      %p184 = scmp.eq.s32.totalorder %s32, 0
      %p185 = por %p183, %p184
      %s187 = sadd.s32 %s186, 1
      %p190 = scmp.eq.s32.totalorder %s26, 1
      %p191 = scmp.ne.s32.totalorder %s186, %s188
      %p192 = scmp.eq.s32.totalorder %s26, 0
      %p193 = por %p191, %p192
      %p194 = scmp.ne.s32.totalorder %s186, %s188
      %p195 = scmp.eq.s32.totalorder %s31, 1
      %p196 = por %p194, %p195
      %p197 = scmp.ne.s32.totalorder %s188, %s189
      %p198 = scmp.eq.s32.totalorder %s31, 0
      %p199 = por %p197, %p198
      %p200 = scmp.ne.s32.totalorder %s188, %s189
      %p201 = scmp.eq.s32.totalorder %s32, 1
      %p202 = por %p200, %p201
      %p204 = scmp.ne.s32.totalorder %s189, %s203
      %p205 = scmp.eq.s32.totalorder %s32, 0
      %p206 = por %p204, %p205
      %s208 = sadd.s32 %s207, 1
      %p211 = scmp.eq.s32.totalorder %s26, 1
      %p212 = scmp.ne.s32.totalorder %s207, %s209
      %p213 = scmp.eq.s32.totalorder %s26, 0
      %p214 = por %p212, %p213
      %p215 = scmp.ne.s32.totalorder %s207, %s209
      %p216 = scmp.eq.s32.totalorder %s31, 1
      %p217 = por %p215, %p216
      %p218 = scmp.ne.s32.totalorder %s209, %s210
      %p219 = scmp.eq.s32.totalorder %s31, 0
      %p220 = por %p218, %p219
      %p221 = scmp.ne.s32.totalorder %s209, %s210
      %p222 = scmp.eq.s32.totalorder %s32, 1
      %p223 = por %p221, %p222
      %p225 = scmp.ne.s32.totalorder %s210, %s224
      %p226 = scmp.eq.s32.totalorder %s32, 0
      %p227 = por %p225, %p226
      %s229 = sadd.s32 %s228, 1
      %p232 = scmp.eq.s32.totalorder %s26, 1
      %p233 = scmp.ne.s32.totalorder %s228, %s230
      %p234 = scmp.eq.s32.totalorder %s26, 0
      %p235 = por %p233, %p234
      %p236 = scmp.ne.s32.totalorder %s228, %s230
      %p237 = scmp.eq.s32.totalorder %s31, 1
      %p238 = por %p236, %p237
      %p239 = scmp.ne.s32.totalorder %s230, %s231
      %p240 = scmp.eq.s32.totalorder %s31, 0
      %p241 = por %p239, %p240
      %p242 = scmp.ne.s32.totalorder %s230, %s231
      %p243 = scmp.eq.s32.totalorder %s32, 1
      %p244 = por %p242, %p243
      %p246 = scmp.ne.s32.totalorder %s231, %s245
      %p247 = scmp.eq.s32.totalorder %s32, 0
      %p248 = por %p246, %p247
      %s250 = sadd.s32 %s249, 1
      %p253 = scmp.eq.s32.totalorder %s26, 1
      %p254 = scmp.ne.s32.totalorder %s249, %s251
      %p255 = scmp.eq.s32.totalorder %s26, 0
      %p256 = por %p254, %p255
      %p257 = scmp.ne.s32.totalorder %s249, %s251
      %p258 = scmp.eq.s32.totalorder %s31, 1
      %p259 = por %p257, %p258
      %p260 = scmp.ne.s32.totalorder %s251, %s252
      %p261 = scmp.eq.s32.totalorder %s31, 0
      %p262 = por %p260, %p261
      %p263 = scmp.ne.s32.totalorder %s251, %s252
      %p264 = scmp.eq.s32.totalorder %s32, 1
      %p265 = por %p263, %p264
      %p267 = scmp.ne.s32.totalorder %s252, %s266
      %p268 = scmp.eq.s32.totalorder %s32, 0
      %p269 = por %p267, %p268
      %s271 = sadd.s32 %s270, 1
      %p274 = scmp.eq.s32.totalorder %s26, 1
      %p275 = scmp.ne.s32.totalorder %s270, %s272
      %p276 = scmp.eq.s32.totalorder %s26, 0
      %p277 = por %p275, %p276
      %p278 = scmp.ne.s32.totalorder %s270, %s272
      %p279 = scmp.eq.s32.totalorder %s31, 1
      %p280 = por %p278, %p279
      %p281 = scmp.ne.s32.totalorder %s272, %s273
      %p282 = scmp.eq.s32.totalorder %s31, 0
      %p283 = por %p281, %p282
      %p284 = scmp.ne.s32.totalorder %s272, %s273
      %p285 = scmp.eq.s32.totalorder %s32, 1
      %p286 = por %p284, %p285
      %p288 = scmp.ne.s32.totalorder %s273, %s287
      %p289 = scmp.eq.s32.totalorder %s32, 0
      %p290 = por %p288, %p289
      %s292 = sadd.s32 %s291, 1
      %p295 = scmp.eq.s32.totalorder %s26, 1
      %p296 = scmp.ne.s32.totalorder %s291, %s293
      %p297 = scmp.eq.s32.totalorder %s26, 0
      %p298 = por %p296, %p297
      %p299 = scmp.ne.s32.totalorder %s291, %s293
      %p300 = scmp.eq.s32.totalorder %s31, 1
      %p301 = por %p299, %p300
      %p302 = scmp.ne.s32.totalorder %s293, %s294
      %p303 = scmp.eq.s32.totalorder %s31, 0
      %p304 = por %p302, %p303
      %p305 = scmp.ne.s32.totalorder %s293, %s294
      %p306 = scmp.eq.s32.totalorder %s32, 1
      %p307 = por %p305, %p306
      %p309 = scmp.ne.s32.totalorder %s294, %s308
      %p310 = scmp.eq.s32.totalorder %s32, 0
      %p311 = por %p309, %p310
      %s312 = ssub.s32 %s26, %s33
      %p313 = scmp.eq.s32.totalorder %s312, 0
      %s315 = sadd.s32 %s314, 1
      %s316 = scalar_select %p313, %s314, %s315
      %p319 = pneg %p313
      %p320 = scmp.eq.s32.totalorder %s26, 1
      %p321 = por %p319, %p320
      %p322 = scmp.ne.s32.totalorder %s314, %s317
      %p323 = scmp.eq.s32.totalorder %s26, 0
      %p324 = por %p322, %p323
      %p325 = scmp.ne.s32.totalorder %s314, %s317
      %p326 = scmp.eq.s32.totalorder %s31, 1
      %p327 = por %p325, %p326
      %p328 = scmp.ne.s32.totalorder %s317, %s318
      %p329 = scmp.eq.s32.totalorder %s31, 0
      %p330 = por %p328, %p329
      %p331 = scmp.ne.s32.totalorder %s317, %s318
      %p332 = scmp.eq.s32.totalorder %s32, 1
      %p333 = por %p331, %p332
      %p335 = scmp.ne.s32.totalorder %s318, %s334
      %p336 = scmp.eq.s32.totalorder %s32, 0
      %p337 = por %p335, %p336
      %p338 = scmp.le.s32.totalorder 1, %s26
      %p339 = scmp.lt.s32.totalorder %s26, 3
      %p340 = pnand %p338, %p339
      %p341 = pneg %p340
      // Predicated region
      $region9: #{lenet5_forward.1} parent=5 // pred_check
        _
      $region10: #{lenet5_forward.1} parent=5 // pred_check_branch
        %343 = sbr.rel (%p340) target = $region12
      $region11: #{lenet5_forward.1} parent=5 // pred_region
        %s344 = ssub.s32 %s26, 1
        // Predicated region
        $region13: #{lenet5_forward.1} parent=11 // pred_check
          %p345 = pneg %p73
        $region14: #{lenet5_forward.1} parent=11 // pred_check_branch
          %347 = sbr.rel (%p345) target = $region16
        $region15: #{lenet5_forward.1} parent=11 // pred_region
          _
        $region16: #{lenet5_forward.1} parent=11 // pred_fallthru
          _
        // Predicated region
        $region17: #{lenet5_forward.1} parent=11 // pred_check
          %p348 = pneg %p94
        $region18: #{lenet5_forward.1} parent=11 // pred_check_branch
          %350 = sbr.rel (%p348) target = $region20
        $region19: #{lenet5_forward.1} parent=11 // pred_region
          _
        $region20: #{lenet5_forward.1} parent=11 // pred_fallthru
          _
        // Predicated region
        $region21: #{lenet5_forward.1} parent=11 // pred_check
          %p351 = pneg %p115
        $region22: #{lenet5_forward.1} parent=11 // pred_check_branch
          %353 = sbr.rel (%p351) target = $region24
        $region23: #{lenet5_forward.1} parent=11 // pred_region
          _
        $region24: #{lenet5_forward.1} parent=11 // pred_fallthru
          _
        // Predicated region
        $region25: #{lenet5_forward.1} parent=11 // pred_check
          %p354 = pneg %p136
        $region26: #{lenet5_forward.1} parent=11 // pred_check_branch
          %356 = sbr.rel (%p354) target = $region28
        $region27: #{lenet5_forward.1} parent=11 // pred_region
          _
        $region28: #{lenet5_forward.1} parent=11 // pred_fallthru
          _
        // Predicated region
        $region29: #{lenet5_forward.1} parent=11 // pred_check
          %p357 = pneg %p157
        $region30: #{lenet5_forward.1} parent=11 // pred_check_branch
          %359 = sbr.rel (%p357) target = $region32
        $region31: #{lenet5_forward.1} parent=11 // pred_region
          %s361 = ssub.s32 10240, 10240
          %362 = vsyncadd [#allocation3], %s361
          %s363 = sshll.u32 [#allocation2], 4
          %s364 = int_to_ptr.vmem [resolvable:$true] %s363
          %369 = dma.hbm_to_vmem [thread:$0]  %s5, 10240, %s364, [#allocation3], 128, 128, 8
        $region32: #{lenet5_forward.1} parent=11 // pred_fallthru
          _
        // Predicated region
        $region33: #{lenet5_forward.1} parent=11 // pred_check
          %p370 = pneg %p178
        $region34: #{lenet5_forward.1} parent=11 // pred_check_branch
          %372 = sbr.rel (%p370) target = $region36
        $region35: #{lenet5_forward.1} parent=11 // pred_region
          %s374 = ssub.s32 16, 16
          %375 = vsyncadd [#allocation6], %s374
          %s377 = sshll.u32 [#allocation5], 4
          %s378 = int_to_ptr.vmem [resolvable:$true] %s377
          %380 = dma.hbm_to_vmem [thread:$0]  %s6, 16, %s378, [#allocation6]
        $region36: #{lenet5_forward.1} parent=11 // pred_fallthru
          _
        // Predicated region
        $region37: #{lenet5_forward.1} parent=11 // pred_check
          %p381 = pneg %p199
        $region38: #{lenet5_forward.1} parent=11 // pred_check_branch
          %383 = sbr.rel (%p381) target = $region40
        $region39: #{lenet5_forward.1} parent=11 // pred_region
          %s385 = ssub.s32 5120, 5120
          %386 = vsyncadd [#allocation6], %s385
          %s387 = sshll.u32 [#allocation7], 4
          %s388 = int_to_ptr.vmem [resolvable:$true] %s387
          %393 = dma.hbm_to_vmem [thread:$0]  %s7, 5120, %s388, [#allocation6], 64, 64, 4
        $region40: #{lenet5_forward.1} parent=11 // pred_fallthru
          _
        // Predicated region
        $region41: #{lenet5_forward.1} parent=11 // pred_check
          %p394 = pneg %p220
        $region42: #{lenet5_forward.1} parent=11 // pred_check_branch
          %396 = sbr.rel (%p394) target = $region44
        $region43: #{lenet5_forward.1} parent=11 // pred_region
          %s398 = ssub.s32 16, 16
          %399 = vsyncadd [#allocation9], %s398
          %s401 = sshll.u32 [#allocation8], 4
          %s402 = int_to_ptr.vmem [resolvable:$true] %s401
          %404 = dma.hbm_to_vmem [thread:$0]  %s8, 16, %s402, [#allocation9]
        $region44: #{lenet5_forward.1} parent=11 // pred_fallthru
          _
        // Predicated region
        $region45: #{lenet5_forward.1} parent=11 // pred_check
          %p405 = pneg %p241
        $region46: #{lenet5_forward.1} parent=11 // pred_check_branch
          %407 = sbr.rel (%p405) target = $region48
        $region47: #{lenet5_forward.1} parent=11 // pred_region
          _
        $region48: #{lenet5_forward.1} parent=11 // pred_fallthru
          _
        // Predicated region
        $region49: #{lenet5_forward.1} parent=11 // pred_check
          %p408 = pneg %p262
        $region50: #{lenet5_forward.1} parent=11 // pred_check_branch
          %410 = sbr.rel (%p408) target = $region52
        $region51: #{lenet5_forward.1} parent=11 // pred_region
          %s412 = ssub.s32 16, 16
          %413 = vsyncadd [#allocation9], %s412
          %s415 = sshll.u32 [#allocation10], 4
          %s416 = int_to_ptr.vmem [resolvable:$true] %s415
          %418 = dma.hbm_to_vmem [thread:$0]  %s10, 16, %s416, [#allocation9]
        $region52: #{lenet5_forward.1} parent=11 // pred_fallthru
          _
        // Predicated region
        $region53: #{lenet5_forward.1} parent=11 // pred_check
          %p419 = pneg %p283
        $region54: #{lenet5_forward.1} parent=11 // pred_check_branch
          %421 = sbr.rel (%p419) target = $region56
        $region55: #{lenet5_forward.1} parent=11 // pred_region
          _
        $region56: #{lenet5_forward.1} parent=11 // pred_fallthru
          _
        // Predicated region
        $region57: #{lenet5_forward.1} parent=11 // pred_check
          %p422 = pneg %p304
        $region58: #{lenet5_forward.1} parent=11 // pred_check_branch
          %424 = sbr.rel (%p422) target = $region60
        $region59: #{lenet5_forward.1} parent=11 // pred_region
          %s426 = ssub.s32 16, 16
          %427 = vsyncadd [#allocation12], %s426
          %s429 = sshll.u32 [#allocation11], 4
          %s430 = int_to_ptr.vmem [resolvable:$true] %s429
          %432 = dma.hbm_to_vmem [thread:$0]  %s12, 16, %s430, [#allocation12]
        $region60: #{lenet5_forward.1} parent=11 // pred_fallthru
          _
      $region12: #{lenet5_forward.1} parent=5 // pred_fallthru
        _
      %p433 = scmp.lt.s32.totalorder %s26, 2
      // Predicated region
      $region61: #{lenet5_forward.1} parent=5 // pred_check
        %p434 = pneg %p433
      $region62: #{lenet5_forward.1} parent=5 // pred_check_branch
        %436 = sbr.rel (%p434) target = $region64
      $region63: #{lenet5_forward.1} parent=5 // pred_region
        // Predicated region
        $region65: #{lenet5_forward.1} parent=63 // pred_check
          %p437 = pneg %p46
        $region66: #{lenet5_forward.1} parent=63 // pred_check_branch
          %439 = sbr.rel (%p437) target = $region68
        $region67: #{lenet5_forward.1} parent=63 // pred_region
          %p440 = scmp.lt.s32.totalorder %s26, 1
          %s441 = scalar_select %p440, %s26, 1
          %s442 = smul.addr %s441, 4
          %s443 = smul.addr %s442, 4
          %s444 = scalar_lea.vmem %s0, %s443
        $region68: #{lenet5_forward.1} parent=63 // pred_fallthru
          _
      $region64: #{lenet5_forward.1} parent=5 // pred_fallthru
        _
      %p445 = scmp.le.s32.totalorder 1, %s26
      %p446 = scmp.lt.s32.totalorder %s26, 3
      %p447 = pnand %p445, %p446
      %p448 = pneg %p447
      // Predicated region
      $region69: #{lenet5_forward.1} parent=5 // pred_check
        _
      $region70: #{lenet5_forward.1} parent=5 // pred_check_branch
        %450 = sbr.rel (%p447) target = $region72
      $region71: #{lenet5_forward.1} parent=5 // pred_region
        %s451 = ssub.s32 %s26, 1
        // Predicated region
        $region73: #{lenet5_forward.1} parent=71 // pred_check
          %p452 = pneg %p157
        $region74: #{lenet5_forward.1} parent=71 // pred_check_branch
          %454 = sbr.rel (%p452) target = $region76
        $region75: #{lenet5_forward.1} parent=71 // pred_region
          %455 = dma.done [#allocation3], 10240
        $region76: #{lenet5_forward.1} parent=71 // pred_fallthru
          _
        // Predicated region
        $region77: #{lenet5_forward.1} parent=71 // pred_check
          %p456 = pneg %p178
        $region78: #{lenet5_forward.1} parent=71 // pred_check_branch
          %458 = sbr.rel (%p456) target = $region80
        $region79: #{lenet5_forward.1} parent=71 // pred_region
          %459 = dma.done [#allocation6], 16
        $region80: #{lenet5_forward.1} parent=71 // pred_fallthru
          _
        // Predicated region
        $region81: #{lenet5_forward.1} parent=71 // pred_check
          %p460 = pneg %p199
        $region82: #{lenet5_forward.1} parent=71 // pred_check_branch
          %462 = sbr.rel (%p460) target = $region84
        $region83: #{lenet5_forward.1} parent=71 // pred_region
          %463 = dma.done [#allocation6], 5120
        $region84: #{lenet5_forward.1} parent=71 // pred_fallthru
          _
        // Predicated region
        $region85: #{lenet5_forward.1} parent=71 // pred_check
          %p464 = pneg %p220
        $region86: #{lenet5_forward.1} parent=71 // pred_check_branch
          %466 = sbr.rel (%p464) target = $region88
        $region87: #{lenet5_forward.1} parent=71 // pred_region
          %467 = dma.done [#allocation9], 16
        $region88: #{lenet5_forward.1} parent=71 // pred_fallthru
          _
        // Predicated region
        $region89: #{lenet5_forward.1} parent=71 // pred_check
          %p468 = pneg %p262
        $region90: #{lenet5_forward.1} parent=71 // pred_check_branch
          %470 = sbr.rel (%p468) target = $region92
        $region91: #{lenet5_forward.1} parent=71 // pred_region
          %471 = dma.done [#allocation9], 16
        $region92: #{lenet5_forward.1} parent=71 // pred_fallthru
          _
        // Predicated region
        $region93: #{lenet5_forward.1} parent=71 // pred_check
          %p472 = pneg %p304
        $region94: #{lenet5_forward.1} parent=71 // pred_check_branch
          %474 = sbr.rel (%p472) target = $region96
        $region95: #{lenet5_forward.1} parent=71 // pred_region
          %475 = dma.done [#allocation12], 16
        $region96: #{lenet5_forward.1} parent=71 // pred_fallthru
          _
        %p476 = scmp.lt.s32.totalorder %s31, 1
        %s477 = scalar_select %p476, %s31, 1
        %s478 = smul.addr %s477, 4
        %s479 = smul.addr %s478, 4
        %s480 = scalar_lea.vmem %s0, %s479
        %p481 = pneg %p52
        %p482 = pneg %p49
        %p483 = pneg %p73
        %p484 = pneg %p70
        %p485 = pneg %p94
        %p486 = pneg %p91
        %p487 = pneg %p115
        %p488 = pneg %p112
        %p489 = pneg %p136
        %p490 = pneg %p133
        %p491 = pneg %p157
        %p492 = pneg %p154
        %p493 = pneg %p178
        %p494 = pneg %p175
        %p495 = pneg %p199
        %p496 = pneg %p196
        %p497 = pneg %p220
        %p498 = pneg %p217
        %p499 = pneg %p241
        %p500 = pneg %p238
        %p501 = pneg %p262
        %p502 = pneg %p259
        %p503 = pneg %p283
        %p504 = pneg %p280
        %p505 = pneg %p304
        %p506 = pneg %p301
        %p507 = pneg %p330
        %p508 = pneg %p327
        %s509 = sand.u32 %s317, 1
        %s510 = scalar_lea.sflag [#allocation4], %s509
        %s511 = sand.u32 %s317, 1
        %s512 = scalar_lea.vmem [#allocation13], %s511
        %p513 = scmp.lt.s32.totalorder %s31, 1
        %s514 = scalar_select %p513, %s31, 1
        %s515 = smul.addr %s514, 4
        %s516 = smul.addr %s515, 4
        %s517 = scalar_lea.vmem %s0, %s516
        %v519 = vld [vmem:[%s517] sm:$0xf]
        %v520 = vld [vmem:[%s517 + $0x4] sm:$0xf]
        %v521 = vld [vmem:[%s517 + $0x8] sm:$0xf]
        %v522 = vld [vmem:[%s517 + $0xc] sm:$0xf]
        %v523 = vld [vmem:[%s1] sm:$0xf]
        %v524 = vld [vmem:[%s1 + $0x4] sm:$0xf]
        %v525 = vld [vmem:[%s1 + $0x8] sm:$0xf]
        %v526 = vld [vmem:[%s1 + $0xc] sm:$0xf]
        %v527 = vld [vmem:[%s1 + $0x10] sm:$0xf]
        %v528 = vld [vmem:[%s1 + $0x14] sm:$0xf]
        %v529 = vld [vmem:[%s1 + $0x18] sm:$0xf]
        %v530 = vld [vmem:[%s1 + $0x1c] sm:$0xf]
        %v531 = vld [vmem:[%s1 + $0x20] sm:$0xf]
        %v532 = vld [vmem:[%s1 + $0x24] sm:$0xf]
        %v533 = vld [vmem:[%s1 + $0x28] sm:$0xf]
        %v534 = vld [vmem:[%s1 + $0x2c] sm:$0xf]
        %v547 = vunpack.c.l.b16 %v523
        %v548 = vunpack.c.l.b16 %v524
        %v549 = vunpack.c.l.b16 %v525
        %v550 = vunpack.c.l.b16 %v526
        %v551 = vunpack.c.l.b16 %v527
        %v552 = vunpack.c.l.b16 %v528
        %v553 = vunpack.c.l.b16 %v529
        %v554 = vunpack.c.l.b16 %v530
        %v555 = vunpack.c.l.b16 %v531
        %v556 = vunpack.c.l.b16 %v532
        %v557 = vunpack.c.l.b16 %v533
        %v558 = vunpack.c.l.b16 %v534
        %v559 = vpack.c.b16 %v548, %v547
        %v560 = vpack.c.b16 %v550, %v549
        %v561 = vpack.c.b16 %v552, %v551
        %v562 = vpack.c.b16 %v554, %v553
        %v563 = vpack.c.b16 %v556, %v555
        %v564 = vpack.c.b16 %v558, %v557
        %v569 = vunpack.c.l.b16 %v519
        %v570 = vunpack.c.l.b16 %v520
        %v571 = vunpack.c.l.b16 %v521
        %v572 = vunpack.c.l.b16 %v522
        %v573 = vpack.c.b16 %v570, %v569
        %v574 = vpack.c.b16 %v572, %v571
        %vm577 = vcmask 261120
        %v579 = vsel %vm577, %v559, 0
        %v582 = vsel %vm577, %v560, 0
        %v585 = vsel %vm577, %v561, 0
        %v588 = vsel %vm577, %v562, 0
        %v591 = vsel %vm577, %v563, 0
        %v594 = vsel %vm577, %v564, 0
        %596 = vmatprep.subr.bf16.mxu0 0
        %597 = vmatpush1.bf16.msra.mxu0 0
        %598 = vmatprep.subr.bf16.mxu0 0
        %599 = vmatpush1.bf16.msra.mxu0 0
        %600 = vmatprep.subr.bf16.mxu0 0
        %601 = vmatpush1.bf16.msra.mxu0 0
        %602 = vmatprep.subr.bf16.mxu0 0
        %603 = vmatpush1.bf16.msra.mxu0 0
        %604 = vmatprep.subr.bf16.mxu0 0
        %605 = vmatpush1.bf16.msra.mxu0 0
        %606 = vmatprep.subr.bf16.mxu0 0
        %607 = vmatpush1.bf16.msra.mxu0 0
        %608 = vmatprep.subr.bf16.mxu0 0
        %609 = vmatpush1.bf16.msra.mxu0 %v574
        %610 = vmatprep.subr.bf16.mxu0 0
        %611 = vmatpush1.bf16.msra.mxu0 %v573
        %612 = vmatprep.subr.bf16.mxu0 0
        %613 = vmatpush2.bf16.msra.mxu0 0
        %614 = vmatprep.subr.bf16.mxu0 0
        %615 = vmatpush2.bf16.msra.mxu0 0
        %616 = vmatprep.subr.bf16.mxu0 0
        %617 = vmatpush2.bf16.msra.mxu0 0
        %618 = vmatprep.subr.bf16.mxu0 0
        %619 = vmatpush2.bf16.msra.mxu0 0
        %620 = vmatprep.subr.bf16.mxu0 0
        %621 = vmatpush2.bf16.msra.mxu0 0
        %622 = vmatprep.subr.bf16.mxu0 0
        %623 = vmatpush2.bf16.msra.mxu0 0
        %624 = vmatprep.subr.bf16.mxu0 0
        %625 = vmatpush2.bf16.msra.mxu0 0
        %626 = vmatprep.subr.bf16.mxu0 0
        %627 = vmatpush2.bf16.msra.mxu0 0
        %628 = vmatprep.mubr.bf16.mxu0 0
        %629 = vmatmul.mubr.bf16.gmra.mxu0 %v579
        %v630 = vpop.f32.mrf.mxu0
        %v631 = vadd.f32 0.0, %v630
        %v632 = vpop.f32.mrf.mxu0
        %v633 = vpop.f32.mrf.mxu0
        %v634 = vadd.f32 0.0, %v633
        %v635 = vpop.f32.mrf.mxu0
        %636 = vmatprep.mubr.bf16.mxu0 0
        %637 = vmatmul.mubr.bf16.gmra.mxu0 %v582
        %v638 = vpop.f32.mrf.mxu0
        %v639 = vadd.f32 0.0, %v638
        %v640 = vpop.f32.mrf.mxu0
        %v641 = vpop.f32.mrf.mxu0
        %v642 = vadd.f32 0.0, %v641
        %v643 = vpop.f32.mrf.mxu0
        %644 = vmatprep.mubr.bf16.mxu0 0
        %645 = vmatmul.mubr.bf16.gmra.mxu0 %v585
        %v646 = vpop.f32.mrf.mxu0
        %v647 = vadd.f32 0.0, %v646
        %v648 = vpop.f32.mrf.mxu0
        %v649 = vpop.f32.mrf.mxu0
        %v650 = vadd.f32 0.0, %v649
        %v651 = vpop.f32.mrf.mxu0
        %652 = vmatprep.mubr.bf16.mxu0 0
        %653 = vmatmul.mubr.bf16.gmra.mxu0 %v588
        %v654 = vpop.f32.mrf.mxu0
        %v655 = vadd.f32 0.0, %v654
        %v656 = vpop.f32.mrf.mxu0
        %v657 = vpop.f32.mrf.mxu0
        %v658 = vadd.f32 0.0, %v657
        %v659 = vpop.f32.mrf.mxu0
        %660 = vmatprep.mubr.bf16.mxu0 0
        %661 = vmatmul.mubr.bf16.gmra.mxu0 %v591
        %v662 = vpop.f32.mrf.mxu0
        %v663 = vadd.f32 0.0, %v662
        %v664 = vpop.f32.mrf.mxu0
        %v665 = vpop.f32.mrf.mxu0
        %v666 = vadd.f32 0.0, %v665
        %v667 = vpop.f32.mrf.mxu0
        %668 = vmatprep.mubr.bf16.mxu0 0
        %669 = vmatmul.mubr.bf16.gmra.mxu0 %v594
        %v670 = vpop.f32.mrf.mxu0
        %v671 = vadd.f32 0.0, %v670
        %v672 = vpop.f32.mrf.mxu0
        %v673 = vpop.f32.mrf.mxu0
        %v674 = vadd.f32 0.0, %v673
        %v675 = vpop.f32.mrf.mxu0
        %676 = vdwg.mxu0
        %v677 = vpack.c.bf16 %v634, %v631
        %v678 = vpack.c.bf16 %v642, %v639
        %v679 = vpack.c.bf16 %v650, %v647
        %v680 = vpack.c.bf16 %v658, %v655
        %v681 = vpack.c.bf16 %v666, %v663
        %v682 = vpack.c.bf16 %v674, %v671
        %v683 = vld [vmem:[%s3] sm:$0xff]
        %v684 = vld [vmem:[%s3 + $0x8] sm:$0xff]
        %v685 = vld [vmem:[%s3 + $0x10] sm:$0xff]
        %v686 = vld [vmem:[%s3 + $0x18] sm:$0xff]
        %v687 = vld [vmem:[%s3 + $0x20] sm:$0xff]
        %v688 = vld [vmem:[%s3 + $0x28] sm:$0xff]
        %v689 = vld [vmem:[%s3 + $0x30] sm:$0xff]
        %v690 = vld [vmem:[%s3 + $0x38] sm:$0xff]
        %v691 = vld [vmem:[%s3 + $0x40] sm:$0xff]
        %v692 = vld [vmem:[%s3 + $0x48] sm:$0xff]
        %v693 = vld [vmem:[%s3 + $0x50] sm:$0xff]
        %v694 = vld [vmem:[%s3 + $0x58] sm:$0xff]
        %v695 = vld [vmem:[%s3 + $0x60] sm:$0xff]
        %v696 = vld [vmem:[%s3 + $0x68] sm:$0xff]
        %v697 = vld [vmem:[%s3 + $0x70] sm:$0xff]
        %v698 = vld [vmem:[%s3 + $0x78] sm:$0xff]
        %v699 = vld [vmem:[%s3 + $0x80] sm:$0xff]
        %v700 = vld [vmem:[%s3 + $0x88] sm:$0xff]
        %v701 = vld [vmem:[%s3 + $0x90] sm:$0xff]
        %v702 = vld [vmem:[%s3 + $0x98] sm:$0xff]
        %v703 = vld [vmem:[%s3 + $0xa0] sm:$0xff]
        %v704 = vld [vmem:[%s3 + $0xa8] sm:$0xff]
        %v705 = vld [vmem:[%s3 + $0xb0] sm:$0xff]
        %v706 = vld [vmem:[%s3 + $0xb8] sm:$0xff]
        %v707 = vld [vmem:[%s3 + $0xc0] sm:$0xff]
        %v708 = vld [vmem:[%s3 + $0xc8] sm:$0xff]
        %v709 = vld [vmem:[%s3 + $0xd0] sm:$0xff]
        %v710 = vld [vmem:[%s3 + $0xd8] sm:$0xff]
        %v711 = vld [vmem:[%s3 + $0xe0] sm:$0xff]
        %v712 = vld [vmem:[%s3 + $0xe8] sm:$0xff]
        %v713 = vld [vmem:[%s3 + $0xf0] sm:$0xff]
        %v714 = vld [vmem:[%s3 + $0xf8] sm:$0xff]
        %v715 = vld [vmem:[%s3 + $0x100] sm:$0xff]
        %v716 = vld [vmem:[%s3 + $0x108] sm:$0xff]
        %v717 = vld [vmem:[%s3 + $0x110] sm:$0xff]
        %v718 = vld [vmem:[%s3 + $0x118] sm:$0xff]
        %v719 = vld [vmem:[%s3 + $0x120] sm:$0xff]
        %v720 = vld [vmem:[%s3 + $0x128] sm:$0xff]
        %v721 = vld [vmem:[%s3 + $0x130] sm:$0xff]
        %v722 = vld [vmem:[%s3 + $0x138] sm:$0xff]
        %v723 = vld [vmem:[%s3 + $0x140] sm:$0xff]
        %v724 = vld [vmem:[%s3 + $0x148] sm:$0xff]
        %v725 = vld [vmem:[%s3 + $0x150] sm:$0xff]
        %v726 = vld [vmem:[%s3 + $0x158] sm:$0xff]
        %v727 = vld [vmem:[%s3 + $0x160] sm:$0xff]
        %v728 = vld [vmem:[%s3 + $0x168] sm:$0xff]
        %v729 = vld [vmem:[%s3 + $0x170] sm:$0xff]
        %v730 = vld [vmem:[%s3 + $0x178] sm:$0xff]
        %v731 = vld [vmem:[%s3 + $0x180] sm:$0xff]
        %v732 = vld [vmem:[%s3 + $0x188] sm:$0xff]
        %v733 = vld [vmem:[%s3 + $0x190] sm:$0xff]
        %v734 = vld [vmem:[%s3 + $0x198] sm:$0xff]
        %v735 = vld [vmem:[%s3 + $0x1a0] sm:$0xff]
        %v736 = vld [vmem:[%s3 + $0x1a8] sm:$0xff]
        %v737 = vld [vmem:[%s3 + $0x1b0] sm:$0xff]
        %v738 = vld [vmem:[%s3 + $0x1b8] sm:$0xff]
        %v739 = vld [vmem:[%s3 + $0x1c0] sm:$0xff]
        %v740 = vld [vmem:[%s3 + $0x1c8] sm:$0xff]
        %v741 = vld [vmem:[%s3 + $0x1d0] sm:$0xff]
        %v742 = vld [vmem:[%s3 + $0x1d8] sm:$0xff]
        %v743 = vld [vmem:[%s3 + $0x1e0] sm:$0xff]
        %v744 = vld [vmem:[%s3 + $0x1e8] sm:$0xff]
        %v745 = vld [vmem:[%s3 + $0x1f0] sm:$0xff]
        %v746 = vld [vmem:[%s3 + $0x1f8] sm:$0xff]
        %v747 = vld [vmem:[%s3 + $0x200] sm:$0xff]
        %v748 = vld [vmem:[%s3 + $0x208] sm:$0xff]
        %v749 = vld [vmem:[%s3 + $0x210] sm:$0xff]
        %v750 = vld [vmem:[%s3 + $0x218] sm:$0xff]
        %v751 = vld [vmem:[%s3 + $0x220] sm:$0xff]
        %v752 = vld [vmem:[%s3 + $0x228] sm:$0xff]
        %v753 = vld [vmem:[%s3 + $0x230] sm:$0xff]
        %v754 = vld [vmem:[%s3 + $0x238] sm:$0xff]
        %v755 = vld [vmem:[%s3 + $0x240] sm:$0xff]
        %v756 = vld [vmem:[%s3 + $0x248] sm:$0xff]
        %v757 = vld [vmem:[%s3 + $0x250] sm:$0xff]
        %v758 = vld [vmem:[%s3 + $0x258] sm:$0xff]
        %v759 = vld [vmem:[%s3 + $0x260] sm:$0xff]
        %v760 = vld [vmem:[%s3 + $0x268] sm:$0xff]
        %v761 = vld [vmem:[%s3 + $0x270] sm:$0xff]
        %v762 = vld [vmem:[%s3 + $0x278] sm:$0xff]
        %v843 = vunpack.c.l.b16 %v683
        %v844 = vunpack.c.h.b16 %v683
        %v845 = vunpack.c.l.b16 %v684
        %v846 = vunpack.c.h.b16 %v684
        %v847 = vunpack.c.l.b16 %v685
        %v848 = vunpack.c.h.b16 %v685
        %v849 = vunpack.c.l.b16 %v686
        %v850 = vunpack.c.h.b16 %v686
        %v851 = vunpack.c.l.b16 %v687
        %v852 = vunpack.c.h.b16 %v687
        %v853 = vunpack.c.l.b16 %v688
        %v854 = vunpack.c.h.b16 %v688
        %v855 = vunpack.c.l.b16 %v689
        %v856 = vunpack.c.h.b16 %v689
        %v857 = vunpack.c.l.b16 %v690
        %v858 = vunpack.c.h.b16 %v690
        %v859 = vunpack.c.l.b16 %v691
        %v860 = vunpack.c.h.b16 %v691
        %v861 = vunpack.c.l.b16 %v692
        %v862 = vunpack.c.h.b16 %v692
        %v863 = vunpack.c.l.b16 %v693
        %v864 = vunpack.c.h.b16 %v693
        %v865 = vunpack.c.l.b16 %v694
        %v866 = vunpack.c.h.b16 %v694
        %v867 = vunpack.c.l.b16 %v695
        %v868 = vunpack.c.h.b16 %v695
        %v869 = vunpack.c.l.b16 %v696
        %v870 = vunpack.c.h.b16 %v696
        %v871 = vunpack.c.l.b16 %v697
        %v872 = vunpack.c.h.b16 %v697
        %v873 = vunpack.c.l.b16 %v698
        %v874 = vunpack.c.h.b16 %v698
        %v875 = vunpack.c.l.b16 %v699
        %v876 = vunpack.c.h.b16 %v699
        %v877 = vunpack.c.l.b16 %v700
        %v878 = vunpack.c.h.b16 %v700
        %v879 = vunpack.c.l.b16 %v701
        %v880 = vunpack.c.h.b16 %v701
        %v881 = vunpack.c.l.b16 %v702
        %v882 = vunpack.c.h.b16 %v702
        %v883 = vunpack.c.l.b16 %v703
        %v884 = vunpack.c.h.b16 %v703
        %v885 = vunpack.c.l.b16 %v704
        %v886 = vunpack.c.h.b16 %v704
        %v887 = vunpack.c.l.b16 %v705
        %v888 = vunpack.c.h.b16 %v705
        %v889 = vunpack.c.l.b16 %v706
        %v890 = vunpack.c.h.b16 %v706
        %v891 = vunpack.c.l.b16 %v707
        %v892 = vunpack.c.h.b16 %v707
        %v893 = vunpack.c.l.b16 %v708
        %v894 = vunpack.c.h.b16 %v708
        %v895 = vunpack.c.l.b16 %v709
        %v896 = vunpack.c.h.b16 %v709
        %v897 = vunpack.c.l.b16 %v710
        %v898 = vunpack.c.h.b16 %v710
        %v899 = vunpack.c.l.b16 %v711
        %v900 = vunpack.c.h.b16 %v711
        %v901 = vunpack.c.l.b16 %v712
        %v902 = vunpack.c.h.b16 %v712
        %v903 = vunpack.c.l.b16 %v713
        %v904 = vunpack.c.h.b16 %v713
        %v905 = vunpack.c.l.b16 %v714
        %v906 = vunpack.c.h.b16 %v714
        %v907 = vunpack.c.l.b16 %v715
        %v908 = vunpack.c.h.b16 %v715
        %v909 = vunpack.c.l.b16 %v716
        %v910 = vunpack.c.h.b16 %v716
        %v911 = vunpack.c.l.b16 %v717
        %v912 = vunpack.c.h.b16 %v717
        %v913 = vunpack.c.l.b16 %v718
        %v914 = vunpack.c.h.b16 %v718
        %v915 = vunpack.c.l.b16 %v719
        %v916 = vunpack.c.h.b16 %v719
        %v917 = vunpack.c.l.b16 %v720
        %v918 = vunpack.c.h.b16 %v720
        %v919 = vunpack.c.l.b16 %v721
        %v920 = vunpack.c.h.b16 %v721
        %v921 = vunpack.c.l.b16 %v722
        %v922 = vunpack.c.h.b16 %v722
        %v923 = vunpack.c.l.b16 %v723
        %v924 = vunpack.c.h.b16 %v723
        %v925 = vunpack.c.l.b16 %v724
        %v926 = vunpack.c.h.b16 %v724
        %v927 = vunpack.c.l.b16 %v725
        %v928 = vunpack.c.h.b16 %v725
        %v929 = vunpack.c.l.b16 %v726
        %v930 = vunpack.c.h.b16 %v726
        %v931 = vunpack.c.l.b16 %v727
        %v932 = vunpack.c.h.b16 %v727
        %v933 = vunpack.c.l.b16 %v728
        %v934 = vunpack.c.h.b16 %v728
        %v935 = vunpack.c.l.b16 %v729
        %v936 = vunpack.c.h.b16 %v729
        %v937 = vunpack.c.l.b16 %v730
        %v938 = vunpack.c.h.b16 %v730
        %v939 = vunpack.c.l.b16 %v731
        %v940 = vunpack.c.h.b16 %v731
        %v941 = vunpack.c.l.b16 %v732
        %v942 = vunpack.c.h.b16 %v732
        %v943 = vunpack.c.l.b16 %v733
        %v944 = vunpack.c.h.b16 %v733
        %v945 = vunpack.c.l.b16 %v734
        %v946 = vunpack.c.h.b16 %v734
        %v947 = vunpack.c.l.b16 %v735
        %v948 = vunpack.c.h.b16 %v735
        %v949 = vunpack.c.l.b16 %v736
        %v950 = vunpack.c.h.b16 %v736
        %v951 = vunpack.c.l.b16 %v737
        %v952 = vunpack.c.h.b16 %v737
        %v953 = vunpack.c.l.b16 %v738
        %v954 = vunpack.c.h.b16 %v738
        %v955 = vunpack.c.l.b16 %v739
        %v956 = vunpack.c.h.b16 %v739
        %v957 = vunpack.c.l.b16 %v740
        %v958 = vunpack.c.h.b16 %v740
        %v959 = vunpack.c.l.b16 %v741
        %v960 = vunpack.c.h.b16 %v741
        %v961 = vunpack.c.l.b16 %v742
        %v962 = vunpack.c.h.b16 %v742
        %v963 = vunpack.c.l.b16 %v743
        %v964 = vunpack.c.h.b16 %v743
        %v965 = vunpack.c.l.b16 %v744
        %v966 = vunpack.c.h.b16 %v744
        %v967 = vunpack.c.l.b16 %v745
        %v968 = vunpack.c.h.b16 %v745
        %v969 = vunpack.c.l.b16 %v746
        %v970 = vunpack.c.h.b16 %v746
        %v971 = vunpack.c.l.b16 %v747
        %v972 = vunpack.c.h.b16 %v747
        %v973 = vunpack.c.l.b16 %v748
        %v974 = vunpack.c.h.b16 %v748
        %v975 = vunpack.c.l.b16 %v749
        %v976 = vunpack.c.h.b16 %v749
        %v977 = vunpack.c.l.b16 %v750
        %v978 = vunpack.c.h.b16 %v750
        %v979 = vunpack.c.l.b16 %v751
        %v980 = vunpack.c.h.b16 %v751
        %v981 = vunpack.c.l.b16 %v752
        %v982 = vunpack.c.h.b16 %v752
        %v983 = vunpack.c.l.b16 %v753
        %v984 = vunpack.c.h.b16 %v753
        %v985 = vunpack.c.l.b16 %v754
        %v986 = vunpack.c.h.b16 %v754
        %v987 = vunpack.c.l.b16 %v755
        %v988 = vunpack.c.h.b16 %v755
        %v989 = vunpack.c.l.b16 %v756
        %v990 = vunpack.c.h.b16 %v756
        %v991 = vunpack.c.l.b16 %v757
        %v992 = vunpack.c.h.b16 %v757
        %v993 = vunpack.c.l.b16 %v758
        %v994 = vunpack.c.h.b16 %v758
        %v995 = vunpack.c.l.b16 %v759
        %v996 = vunpack.c.h.b16 %v759
        %v997 = vunpack.c.l.b16 %v760
        %v998 = vunpack.c.h.b16 %v760
        %v999 = vunpack.c.l.b16 %v761
        %v1000 = vunpack.c.h.b16 %v761
        %v1001 = vunpack.c.l.b16 %v762
        %v1002 = vunpack.c.h.b16 %v762
        %v1003 = vpack.c.b16 %v845, %v843
        %v1004 = vpack.c.b16 %v846, %v844
        %v1005 = vpack.c.b16 %v849, %v847
        %v1006 = vpack.c.b16 %v850, %v848
        %v1007 = vpack.c.b16 %v853, %v851
        %v1008 = vpack.c.b16 %v854, %v852
        %v1009 = vpack.c.b16 %v857, %v855
        %v1010 = vpack.c.b16 %v858, %v856
        %v1011 = vpack.c.b16 %v861, %v859
        %v1012 = vpack.c.b16 %v862, %v860
        %v1013 = vpack.c.b16 %v865, %v863
        %v1014 = vpack.c.b16 %v866, %v864
        %v1015 = vpack.c.b16 %v869, %v867
        %v1016 = vpack.c.b16 %v870, %v868
        %v1017 = vpack.c.b16 %v873, %v871
        %v1018 = vpack.c.b16 %v874, %v872
        %v1019 = vpack.c.b16 %v877, %v875
        %v1020 = vpack.c.b16 %v878, %v876
        %v1021 = vpack.c.b16 %v881, %v879
        %v1022 = vpack.c.b16 %v882, %v880
        %v1023 = vpack.c.b16 %v885, %v883
        %v1024 = vpack.c.b16 %v886, %v884
        %v1025 = vpack.c.b16 %v889, %v887
        %v1026 = vpack.c.b16 %v890, %v888
        %v1027 = vpack.c.b16 %v893, %v891
        %v1028 = vpack.c.b16 %v894, %v892
        %v1029 = vpack.c.b16 %v897, %v895
        %v1030 = vpack.c.b16 %v898, %v896
        %v1031 = vpack.c.b16 %v901, %v899
        %v1032 = vpack.c.b16 %v902, %v900
        %v1033 = vpack.c.b16 %v905, %v903
        %v1034 = vpack.c.b16 %v906, %v904
        %v1035 = vpack.c.b16 %v909, %v907
        %v1036 = vpack.c.b16 %v910, %v908
        %v1037 = vpack.c.b16 %v913, %v911
        %v1038 = vpack.c.b16 %v914, %v912
        %v1039 = vpack.c.b16 %v917, %v915
        %v1040 = vpack.c.b16 %v918, %v916
        %v1041 = vpack.c.b16 %v921, %v919
        %v1042 = vpack.c.b16 %v922, %v920
        %v1043 = vpack.c.b16 %v925, %v923
        %v1044 = vpack.c.b16 %v926, %v924
        %v1045 = vpack.c.b16 %v929, %v927
        %v1046 = vpack.c.b16 %v930, %v928
        %v1047 = vpack.c.b16 %v933, %v931
        %v1048 = vpack.c.b16 %v934, %v932
        %v1049 = vpack.c.b16 %v937, %v935
        %v1050 = vpack.c.b16 %v938, %v936
        %v1051 = vpack.c.b16 %v941, %v939
        %v1052 = vpack.c.b16 %v942, %v940
        %v1053 = vpack.c.b16 %v945, %v943
        %v1054 = vpack.c.b16 %v946, %v944
        %v1055 = vpack.c.b16 %v949, %v947
        %v1056 = vpack.c.b16 %v950, %v948
        %v1057 = vpack.c.b16 %v953, %v951
        %v1058 = vpack.c.b16 %v954, %v952
        %v1059 = vpack.c.b16 %v957, %v955
        %v1060 = vpack.c.b16 %v958, %v956
        %v1061 = vpack.c.b16 %v961, %v959
        %v1062 = vpack.c.b16 %v962, %v960
        %v1063 = vpack.c.b16 %v965, %v963
        %v1064 = vpack.c.b16 %v966, %v964
        %v1065 = vpack.c.b16 %v969, %v967
        %v1066 = vpack.c.b16 %v970, %v968
        %v1067 = vpack.c.b16 %v973, %v971
        %v1068 = vpack.c.b16 %v974, %v972
        %v1069 = vpack.c.b16 %v977, %v975
        %v1070 = vpack.c.b16 %v978, %v976
        %v1071 = vpack.c.b16 %v981, %v979
        %v1072 = vpack.c.b16 %v982, %v980
        %v1073 = vpack.c.b16 %v985, %v983
        %v1074 = vpack.c.b16 %v986, %v984
        %v1075 = vpack.c.b16 %v989, %v987
        %v1076 = vpack.c.b16 %v990, %v988
        %v1077 = vpack.c.b16 %v993, %v991
        %v1078 = vpack.c.b16 %v994, %v992
        %v1079 = vpack.c.b16 %v997, %v995
        %v1080 = vpack.c.b16 %v998, %v996
        %v1081 = vpack.c.b16 %v1001, %v999
        %v1082 = vpack.c.b16 %v1002, %v1000
        %1163 = vmatprep.subr.bf16.mxu0 %v1018
        %1164 = vmatpush1.bf16.msra.mxu0 %v1017
        %1165 = vmatprep.subr.bf16.mxu0 %v1016
        %1166 = vmatpush1.bf16.msra.mxu0 %v1015
        %1167 = vmatprep.subr.bf16.mxu0 %v1014
        %1168 = vmatpush1.bf16.msra.mxu0 %v1013
        %1169 = vmatprep.subr.bf16.mxu0 %v1012
        %1170 = vmatpush1.bf16.msra.mxu0 %v1011
        %1171 = vmatprep.subr.bf16.mxu0 %v1010
        %1172 = vmatpush1.bf16.msra.mxu0 %v1009
        %1173 = vmatprep.subr.bf16.mxu0 %v1008
        %1174 = vmatpush1.bf16.msra.mxu0 %v1007
        %1175 = vmatprep.subr.bf16.mxu0 %v1006
        %1176 = vmatpush1.bf16.msra.mxu0 %v1005
        %1177 = vmatprep.subr.bf16.mxu0 %v1004
        %1178 = vmatpush1.bf16.msra.mxu0 %v1003
        %1179 = vmatprep.subr.bf16.mxu0 %v1034
        %1180 = vmatpush2.bf16.msra.mxu0 %v1033
        %1181 = vmatprep.subr.bf16.mxu0 %v1032
        %1182 = vmatpush2.bf16.msra.mxu0 %v1031
        %1183 = vmatprep.subr.bf16.mxu0 %v1030
        %1184 = vmatpush2.bf16.msra.mxu0 %v1029
        %1185 = vmatprep.subr.bf16.mxu0 %v1028
        %1186 = vmatpush2.bf16.msra.mxu0 %v1027
        %1187 = vmatprep.subr.bf16.mxu0 %v1026
        %1188 = vmatpush2.bf16.msra.mxu0 %v1025
        %1189 = vmatprep.subr.bf16.mxu0 %v1024
        %1190 = vmatpush2.bf16.msra.mxu0 %v1023
        %1191 = vmatprep.subr.bf16.mxu0 %v1022
        %1192 = vmatpush2.bf16.msra.mxu0 %v1021
        %1193 = vmatprep.subr.bf16.mxu0 %v1020
        %1194 = vmatpush2.bf16.msra.mxu0 %v1019
        %1195 = vmatprep.mubr.bf16.mxu0 %v678
        %1196 = vmatmul.mubr.bf16.gmra.mxu0 %v677
        %v1197 = vpop.f32.mrf.mxu0
        %v1198 = vadd.f32 0.0, %v1197
        %v1199 = vpop.f32.mrf.mxu0
        %v1200 = vadd.f32 0.0, %v1199
        %v1201 = vpop.f32.mrf.mxu0
        %v1202 = vadd.f32 0.0, %v1201
        %v1203 = vpop.f32.mrf.mxu0
        %v1204 = vadd.f32 0.0, %v1203
        %1205 = vdwg.mxu0
        %1206 = vmatprep.subr.bf16.mxu0 %v1050
        %1207 = vmatpush1.bf16.msra.mxu0 %v1049
        %1208 = vmatprep.subr.bf16.mxu0 %v1048
        %1209 = vmatpush1.bf16.msra.mxu0 %v1047
        %1210 = vmatprep.subr.bf16.mxu0 %v1046
        %1211 = vmatpush1.bf16.msra.mxu0 %v1045
        %1212 = vmatprep.subr.bf16.mxu0 %v1044
        %1213 = vmatpush1.bf16.msra.mxu0 %v1043
        %1214 = vmatprep.subr.bf16.mxu0 %v1042
        %1215 = vmatpush1.bf16.msra.mxu0 %v1041
        %1216 = vmatprep.subr.bf16.mxu0 %v1040
        %1217 = vmatpush1.bf16.msra.mxu0 %v1039
        %1218 = vmatprep.subr.bf16.mxu0 %v1038
        %1219 = vmatpush1.bf16.msra.mxu0 %v1037
        %1220 = vmatprep.subr.bf16.mxu0 %v1036
        %1221 = vmatpush1.bf16.msra.mxu0 %v1035
        %1222 = vmatprep.subr.bf16.mxu0 %v1066
        %1223 = vmatpush2.bf16.msra.mxu0 %v1065
        %1224 = vmatprep.subr.bf16.mxu0 %v1064
        %1225 = vmatpush2.bf16.msra.mxu0 %v1063
        %1226 = vmatprep.subr.bf16.mxu0 %v1062
        %1227 = vmatpush2.bf16.msra.mxu0 %v1061
        %1228 = vmatprep.subr.bf16.mxu0 %v1060
        %1229 = vmatpush2.bf16.msra.mxu0 %v1059
        %1230 = vmatprep.subr.bf16.mxu0 %v1058
        %1231 = vmatpush2.bf16.msra.mxu0 %v1057
        %1232 = vmatprep.subr.bf16.mxu0 %v1056
        %1233 = vmatpush2.bf16.msra.mxu0 %v1055
        %1234 = vmatprep.subr.bf16.mxu0 %v1054
        %1235 = vmatpush2.bf16.msra.mxu0 %v1053
        %1236 = vmatprep.subr.bf16.mxu0 %v1052
        %1237 = vmatpush2.bf16.msra.mxu0 %v1051
        %1238 = vmatprep.mubr.bf16.mxu0 %v680
        %1239 = vmatmul.mubr.bf16.gmra.mxu0 %v679
        %v1240 = vpop.f32.mrf.mxu0
        %v1241 = vadd.f32 %v1198, %v1240
        %v1242 = vpop.f32.mrf.mxu0
        %v1243 = vadd.f32 %v1200, %v1242
        %v1244 = vpop.f32.mrf.mxu0
        %v1245 = vadd.f32 %v1202, %v1244
        %v1246 = vpop.f32.mrf.mxu0
        %v1247 = vadd.f32 %v1204, %v1246
        %1248 = vdwg.mxu0
        %1249 = vmatprep.subr.bf16.mxu0 %v1082
        %1250 = vmatpush1.bf16.msra.mxu0 %v1081
        %1251 = vmatprep.subr.bf16.mxu0 %v1080
        %1252 = vmatpush1.bf16.msra.mxu0 %v1079
        %1253 = vmatprep.subr.bf16.mxu0 %v1078
        %1254 = vmatpush1.bf16.msra.mxu0 %v1077
        %1255 = vmatprep.subr.bf16.mxu0 %v1076
        %1256 = vmatpush1.bf16.msra.mxu0 %v1075
        %1257 = vmatprep.subr.bf16.mxu0 %v1074
        %1258 = vmatpush1.bf16.msra.mxu0 %v1073
        %1259 = vmatprep.subr.bf16.mxu0 %v1072
        %1260 = vmatpush1.bf16.msra.mxu0 %v1071
        %1261 = vmatprep.subr.bf16.mxu0 %v1070
        %1262 = vmatpush1.bf16.msra.mxu0 %v1069
        %1263 = vmatprep.subr.bf16.mxu0 %v1068
        %1264 = vmatpush1.bf16.msra.mxu0 %v1067
        %1265 = vmatprep.subr.bf16.mxu0 0
        %1266 = vmatpush2.bf16.msra.mxu0 0
        %1267 = vmatprep.subr.bf16.mxu0 0
        %1268 = vmatpush2.bf16.msra.mxu0 0
        %1269 = vmatprep.subr.bf16.mxu0 0
        %1270 = vmatpush2.bf16.msra.mxu0 0
        %1271 = vmatprep.subr.bf16.mxu0 0
        %1272 = vmatpush2.bf16.msra.mxu0 0
        %1273 = vmatprep.subr.bf16.mxu0 0
        %1274 = vmatpush2.bf16.msra.mxu0 0
        %1275 = vmatprep.subr.bf16.mxu0 0
        %1276 = vmatpush2.bf16.msra.mxu0 0
        %1277 = vmatprep.subr.bf16.mxu0 0
        %1278 = vmatpush2.bf16.msra.mxu0 0
        %1279 = vmatprep.subr.bf16.mxu0 0
        %1280 = vmatpush2.bf16.msra.mxu0 0
        %1281 = vmatprep.mubr.bf16.mxu0 0
        %1282 = vmatmul.mubr.bf16.gmra.mxu0 %v681
        %v1283 = vpop.f32.mrf.mxu0
        %v1284 = vadd.f32 %v1241, %v1283
        %v1285 = vpop.f32.mrf.mxu0
        %v1286 = vadd.f32 %v1243, %v1285
        %v1287 = vpop.f32.mrf.mxu0
        %v1288 = vadd.f32 %v1245, %v1287
        %v1289 = vpop.f32.mrf.mxu0
        %v1290 = vadd.f32 %v1247, %v1289
        %1291 = vdwg.mxu0
        %1292 = vmatprep.subr.bf16.mxu0 %v1018
        %1293 = vmatpush1.bf16.msra.mxu0 %v1017
        %1294 = vmatprep.subr.bf16.mxu0 %v1016
        %1295 = vmatpush1.bf16.msra.mxu0 %v1015
        %1296 = vmatprep.subr.bf16.mxu0 %v1014
        %1297 = vmatpush1.bf16.msra.mxu0 %v1013
        %1298 = vmatprep.subr.bf16.mxu0 %v1012
        %1299 = vmatpush1.bf16.msra.mxu0 %v1011
        %1300 = vmatprep.subr.bf16.mxu0 %v1010
        %1301 = vmatpush1.bf16.msra.mxu0 %v1009
        %1302 = vmatprep.subr.bf16.mxu0 %v1008
        %1303 = vmatpush1.bf16.msra.mxu0 %v1007
        %1304 = vmatprep.subr.bf16.mxu0 %v1006
        %1305 = vmatpush1.bf16.msra.mxu0 %v1005
        %1306 = vmatprep.subr.bf16.mxu0 %v1004
        %1307 = vmatpush1.bf16.msra.mxu0 %v1003
        %1308 = vmatprep.subr.bf16.mxu0 %v1034
        %1309 = vmatpush2.bf16.msra.mxu0 %v1033
        %1310 = vmatprep.subr.bf16.mxu0 %v1032
        %1311 = vmatpush2.bf16.msra.mxu0 %v1031
        %1312 = vmatprep.subr.bf16.mxu0 %v1030
        %1313 = vmatpush2.bf16.msra.mxu0 %v1029
        %1314 = vmatprep.subr.bf16.mxu0 %v1028
        %1315 = vmatpush2.bf16.msra.mxu0 %v1027
        %1316 = vmatprep.subr.bf16.mxu0 %v1026
        %1317 = vmatpush2.bf16.msra.mxu0 %v1025
        %1318 = vmatprep.subr.bf16.mxu0 %v1024
        %1319 = vmatpush2.bf16.msra.mxu0 %v1023
        %1320 = vmatprep.subr.bf16.mxu0 %v1022
        %1321 = vmatpush2.bf16.msra.mxu0 %v1021
        %1322 = vmatprep.subr.bf16.mxu0 %v1020
        %1323 = vmatpush2.bf16.msra.mxu0 %v1019
        %1324 = vmatprep.mubr.bf16.mxu0 %v679
        %1325 = vmatmul.mubr.bf16.gmra.mxu0 %v678
        %v1326 = vpop.f32.mrf.mxu0
        %v1327 = vadd.f32 0.0, %v1326
        %v1328 = vpop.f32.mrf.mxu0
        %v1329 = vadd.f32 0.0, %v1328
        %v1330 = vpop.f32.mrf.mxu0
        %v1331 = vadd.f32 0.0, %v1330
        %v1332 = vpop.f32.mrf.mxu0
        %v1333 = vadd.f32 0.0, %v1332
        %1334 = vdwg.mxu0
        %1335 = vmatprep.subr.bf16.mxu0 %v1050
        %1336 = vmatpush1.bf16.msra.mxu0 %v1049
        %1337 = vmatprep.subr.bf16.mxu0 %v1048
        %1338 = vmatpush1.bf16.msra.mxu0 %v1047
        %1339 = vmatprep.subr.bf16.mxu0 %v1046
        %1340 = vmatpush1.bf16.msra.mxu0 %v1045
        %1341 = vmatprep.subr.bf16.mxu0 %v1044
        %1342 = vmatpush1.bf16.msra.mxu0 %v1043
        %1343 = vmatprep.subr.bf16.mxu0 %v1042
        %1344 = vmatpush1.bf16.msra.mxu0 %v1041
        %1345 = vmatprep.subr.bf16.mxu0 %v1040
        %1346 = vmatpush1.bf16.msra.mxu0 %v1039
        %1347 = vmatprep.subr.bf16.mxu0 %v1038
        %1348 = vmatpush1.bf16.msra.mxu0 %v1037
        %1349 = vmatprep.subr.bf16.mxu0 %v1036
        %1350 = vmatpush1.bf16.msra.mxu0 %v1035
        %1351 = vmatprep.subr.bf16.mxu0 %v1066
        %1352 = vmatpush2.bf16.msra.mxu0 %v1065
        %1353 = vmatprep.subr.bf16.mxu0 %v1064
        %1354 = vmatpush2.bf16.msra.mxu0 %v1063
        %1355 = vmatprep.subr.bf16.mxu0 %v1062
        %1356 = vmatpush2.bf16.msra.mxu0 %v1061
        %1357 = vmatprep.subr.bf16.mxu0 %v1060
        %1358 = vmatpush2.bf16.msra.mxu0 %v1059
        %1359 = vmatprep.subr.bf16.mxu0 %v1058
        %1360 = vmatpush2.bf16.msra.mxu0 %v1057
        %1361 = vmatprep.subr.bf16.mxu0 %v1056
        %1362 = vmatpush2.bf16.msra.mxu0 %v1055
        %1363 = vmatprep.subr.bf16.mxu0 %v1054
        %1364 = vmatpush2.bf16.msra.mxu0 %v1053
        %1365 = vmatprep.subr.bf16.mxu0 %v1052
        %1366 = vmatpush2.bf16.msra.mxu0 %v1051
        %1367 = vmatprep.mubr.bf16.mxu0 %v681
        %1368 = vmatmul.mubr.bf16.gmra.mxu0 %v680
        %v1369 = vpop.f32.mrf.mxu0
        %v1370 = vadd.f32 %v1327, %v1369
        %v1371 = vpop.f32.mrf.mxu0
        %v1372 = vadd.f32 %v1329, %v1371
        %v1373 = vpop.f32.mrf.mxu0
        %v1374 = vadd.f32 %v1331, %v1373
        %v1375 = vpop.f32.mrf.mxu0
        %v1376 = vadd.f32 %v1333, %v1375
        %1377 = vdwg.mxu0
        %1378 = vmatprep.subr.bf16.mxu0 %v1082
        %1379 = vmatpush1.bf16.msra.mxu0 %v1081
        %1380 = vmatprep.subr.bf16.mxu0 %v1080
        %1381 = vmatpush1.bf16.msra.mxu0 %v1079
        %1382 = vmatprep.subr.bf16.mxu0 %v1078
        %1383 = vmatpush1.bf16.msra.mxu0 %v1077
        %1384 = vmatprep.subr.bf16.mxu0 %v1076
        %1385 = vmatpush1.bf16.msra.mxu0 %v1075
        %1386 = vmatprep.subr.bf16.mxu0 %v1074
        %1387 = vmatpush1.bf16.msra.mxu0 %v1073
        %1388 = vmatprep.subr.bf16.mxu0 %v1072
        %1389 = vmatpush1.bf16.msra.mxu0 %v1071
        %1390 = vmatprep.subr.bf16.mxu0 %v1070
        %1391 = vmatpush1.bf16.msra.mxu0 %v1069
        %1392 = vmatprep.subr.bf16.mxu0 %v1068
        %1393 = vmatpush1.bf16.msra.mxu0 %v1067
        %1394 = vmatprep.subr.bf16.mxu0 0
        %1395 = vmatpush2.bf16.msra.mxu0 0
        %1396 = vmatprep.subr.bf16.mxu0 0
        %1397 = vmatpush2.bf16.msra.mxu0 0
        %1398 = vmatprep.subr.bf16.mxu0 0
        %1399 = vmatpush2.bf16.msra.mxu0 0
        %1400 = vmatprep.subr.bf16.mxu0 0
        %1401 = vmatpush2.bf16.msra.mxu0 0
        %1402 = vmatprep.subr.bf16.mxu0 0
        %1403 = vmatpush2.bf16.msra.mxu0 0
        %1404 = vmatprep.subr.bf16.mxu0 0
        %1405 = vmatpush2.bf16.msra.mxu0 0
        %1406 = vmatprep.subr.bf16.mxu0 0
        %1407 = vmatpush2.bf16.msra.mxu0 0
        %1408 = vmatprep.subr.bf16.mxu0 0
        %1409 = vmatpush2.bf16.msra.mxu0 0
        %1410 = vmatprep.mubr.bf16.mxu0 0
        %1411 = vmatmul.mubr.bf16.gmra.mxu0 %v682
        %v1412 = vpop.f32.mrf.mxu0
        %v1413 = vadd.f32 %v1370, %v1412
        %v1414 = vpop.f32.mrf.mxu0
        %v1415 = vadd.f32 %v1372, %v1414
        %v1416 = vpop.f32.mrf.mxu0
        %v1417 = vadd.f32 %v1374, %v1416
        %v1418 = vpop.f32.mrf.mxu0
        %v1419 = vadd.f32 %v1376, %v1418
        %1420 = vdwg.mxu0
        %v1421 = vmax.f32 %v1284, %v1413
        %v1422 = vmax.f32 %v1286, %v1415
        %v1423 = vmax.f32 %v1288, %v1417
        %v1424 = vmax.f32 %v1290, %v1419
        %v1425 = vmax.f32 %v1421, %v1422
        %v1426 = vmax.f32 %v1423, %v1424
        %v1427 = vld [vmem:[%s4] sm:$0x1]
        %v1429 = vlaneseq
        %v1430 = vshrl.u32 %v1429, 7
        %v1431 = vsub.s32 0, %v1430
        %v1432 = vrot.slane %v1427, %v1431
        %v1434 = vadd.f32 %v1425, %v1432
        %v1435 = vadd.f32 %v1426, %v1432
        %v1436 = vmax.f32 %v1434, 0.0
        %v1437 = vmax.f32 %v1435, 0.0
        %v1438 = vpack.c.bf16 %v1437, %v1436
        %v1439 = vld [vmem:[%s2] sm:$0xf]
        %v1440 = vld [vmem:[%s2 + $0x4] sm:$0xf]
        %v1441 = vld [vmem:[%s2 + $0x8] sm:$0xf]
        %v1442 = vld [vmem:[%s2 + $0xc] sm:$0xf]
        %v1443 = vld [vmem:[%s2 + $0x10] sm:$0xf]
        %v1444 = vld [vmem:[%s2 + $0x14] sm:$0xf]
        %v1451 = vunpack.c.l.b16 %v1439
        %v1452 = vunpack.c.l.b16 %v1440
        %v1453 = vunpack.c.l.b16 %v1441
        %v1454 = vunpack.c.l.b16 %v1442
        %v1455 = vunpack.c.l.b16 %v1443
        %v1456 = vunpack.c.l.b16 %v1444
        %v1457 = vpack.c.b16 %v1452, %v1451
        %v1458 = vpack.c.b16 %v1454, %v1453
        %v1459 = vpack.c.b16 %v1456, %v1455
        %vm1460 = vcmask 130048
        %v1462 = vsel %vm1460, %v1457, 0
        %v1465 = vsel %vm1460, %v1458, 0
        %v1468 = vsel %vm1460, %v1459, 0
        %1470 = vmatprep.subr.bf16.mxu0 0
        %1471 = vmatpush1.bf16.msra.mxu0 0
        %1472 = vmatprep.subr.bf16.mxu0 0
        %1473 = vmatpush1.bf16.msra.mxu0 0
        %1474 = vmatprep.subr.bf16.mxu0 0
        %1475 = vmatpush1.bf16.msra.mxu0 0
        %1476 = vmatprep.subr.bf16.mxu0 0
        %1477 = vmatpush1.bf16.msra.mxu0 0
        %1478 = vmatprep.subr.bf16.mxu0 0
        %1479 = vmatpush1.bf16.msra.mxu0 0
        %1480 = vmatprep.subr.bf16.mxu0 0
        %1481 = vmatpush1.bf16.msra.mxu0 0
        %1482 = vmatprep.subr.bf16.mxu0 0
        %1483 = vmatpush1.bf16.msra.mxu0 0
        %1484 = vmatprep.subr.bf16.mxu0 0
        %1485 = vmatpush1.bf16.msra.mxu0 %v1438
        %1486 = vmatprep.subr.bf16.mxu0 0
        %1487 = vmatpush2.bf16.msra.mxu0 0
        %1488 = vmatprep.subr.bf16.mxu0 0
        %1489 = vmatpush2.bf16.msra.mxu0 0
        %1490 = vmatprep.subr.bf16.mxu0 0
        %1491 = vmatpush2.bf16.msra.mxu0 0
        %1492 = vmatprep.subr.bf16.mxu0 0
        %1493 = vmatpush2.bf16.msra.mxu0 0
        %1494 = vmatprep.subr.bf16.mxu0 0
        %1495 = vmatpush2.bf16.msra.mxu0 0
        %1496 = vmatprep.subr.bf16.mxu0 0
        %1497 = vmatpush2.bf16.msra.mxu0 0
        %1498 = vmatprep.subr.bf16.mxu0 0
        %1499 = vmatpush2.bf16.msra.mxu0 0
        %1500 = vmatprep.subr.bf16.mxu0 0
        %1501 = vmatpush2.bf16.msra.mxu0 0
        %1502 = vmatprep.mubr.bf16.mxu0 0
        %1503 = vmatmul.mubr.bf16.gmra.mxu0 %v1462
        %v1504 = vpop.f32.mrf.mxu0
        %v1505 = vadd.f32 0.0, %v1504
        %v1506 = vpop.f32.mrf.mxu0
        %v1507 = vpop.f32.mrf.mxu0
        %v1508 = vadd.f32 0.0, %v1507
        %v1509 = vpop.f32.mrf.mxu0
        %1510 = vmatprep.mubr.bf16.mxu0 0
        %1511 = vmatmul.mubr.bf16.gmra.mxu0 %v1465
        %v1512 = vpop.f32.mrf.mxu0
        %v1513 = vadd.f32 0.0, %v1512
        %v1514 = vpop.f32.mrf.mxu0
        %v1515 = vpop.f32.mrf.mxu0
        %v1516 = vadd.f32 0.0, %v1515
        %v1517 = vpop.f32.mrf.mxu0
        %1518 = vmatprep.mubr.bf16.mxu0 0
        %1519 = vmatmul.mubr.bf16.gmra.mxu0 %v1468
        %v1520 = vpop.f32.mrf.mxu0
        %v1521 = vadd.f32 0.0, %v1520
        %v1522 = vpop.f32.mrf.mxu0
        %v1523 = vpop.f32.mrf.mxu0
        %v1524 = vadd.f32 0.0, %v1523
        %v1525 = vpop.f32.mrf.mxu0
        %1526 = vdwg.mxu0
        %v1527 = vpack.c.bf16 %v1508, %v1505
        %v1528 = vpack.c.bf16 %v1516, %v1513
        %v1529 = vpack.c.bf16 %v1524, %v1521
        %v1531 = vrot.slane %v1527, 4
        %v1534 = vrot.slane %v1528, 4
        %v1536 = vld [vmem:[#allocation2] sm:$0xff]
        %v1537 = vld [vmem:[#allocation2 + $0x8] sm:$0xff]
        %v1538 = vld [vmem:[#allocation2 + $0x10] sm:$0xff]
        %v1539 = vld [vmem:[#allocation2 + $0x18] sm:$0xff]
        %v1540 = vld [vmem:[#allocation2 + $0x20] sm:$0xff]
        %v1541 = vld [vmem:[#allocation2 + $0x28] sm:$0xff]
        %v1542 = vld [vmem:[#allocation2 + $0x30] sm:$0xff]
        %v1543 = vld [vmem:[#allocation2 + $0x38] sm:$0xff]
        %v1544 = vld [vmem:[#allocation2 + $0x40] sm:$0xff]
        %v1545 = vld [vmem:[#allocation2 + $0x48] sm:$0xff]
        %v1546 = vld [vmem:[#allocation2 + $0x50] sm:$0xff]
        %v1547 = vld [vmem:[#allocation2 + $0x58] sm:$0xff]
        %v1548 = vld [vmem:[#allocation2 + $0x60] sm:$0xff]
        %v1549 = vld [vmem:[#allocation2 + $0x68] sm:$0xff]
        %v1550 = vld [vmem:[#allocation2 + $0x70] sm:$0xff]
        %v1551 = vld [vmem:[#allocation2 + $0x78] sm:$0xff]
        %v1552 = vld [vmem:[#allocation2 + $0x80] sm:$0xff]
        %v1553 = vld [vmem:[#allocation2 + $0x88] sm:$0xff]
        %v1554 = vld [vmem:[#allocation2 + $0x90] sm:$0xff]
        %v1555 = vld [vmem:[#allocation2 + $0x98] sm:$0xff]
        %v1556 = vld [vmem:[#allocation2 + $0xa0] sm:$0xff]
        %v1557 = vld [vmem:[#allocation2 + $0xa8] sm:$0xff]
        %v1558 = vld [vmem:[#allocation2 + $0xb0] sm:$0xff]
        %v1559 = vld [vmem:[#allocation2 + $0xb8] sm:$0xff]
        %v1560 = vld [vmem:[#allocation2 + $0xc0] sm:$0xff]
        %v1561 = vld [vmem:[#allocation2 + $0xc8] sm:$0xff]
        %v1562 = vld [vmem:[#allocation2 + $0xd0] sm:$0xff]
        %v1563 = vld [vmem:[#allocation2 + $0xd8] sm:$0xff]
        %v1564 = vld [vmem:[#allocation2 + $0xe0] sm:$0xff]
        %v1565 = vld [vmem:[#allocation2 + $0xe8] sm:$0xff]
        %v1566 = vld [vmem:[#allocation2 + $0xf0] sm:$0xff]
        %v1567 = vld [vmem:[#allocation2 + $0xf8] sm:$0xff]
        %v1568 = vld [vmem:[#allocation2 + $0x100] sm:$0xff]
        %v1569 = vld [vmem:[#allocation2 + $0x108] sm:$0xff]
        %v1570 = vld [vmem:[#allocation2 + $0x110] sm:$0xff]
        %v1571 = vld [vmem:[#allocation2 + $0x118] sm:$0xff]
        %v1572 = vld [vmem:[#allocation2 + $0x120] sm:$0xff]
        %v1573 = vld [vmem:[#allocation2 + $0x128] sm:$0xff]
        %v1574 = vld [vmem:[#allocation2 + $0x130] sm:$0xff]
        %v1575 = vld [vmem:[#allocation2 + $0x138] sm:$0xff]
        %v1576 = vld [vmem:[#allocation2 + $0x140] sm:$0xff]
        %v1577 = vld [vmem:[#allocation2 + $0x148] sm:$0xff]
        %v1578 = vld [vmem:[#allocation2 + $0x150] sm:$0xff]
        %v1579 = vld [vmem:[#allocation2 + $0x158] sm:$0xff]
        %v1580 = vld [vmem:[#allocation2 + $0x160] sm:$0xff]
        %v1581 = vld [vmem:[#allocation2 + $0x168] sm:$0xff]
        %v1582 = vld [vmem:[#allocation2 + $0x170] sm:$0xff]
        %v1583 = vld [vmem:[#allocation2 + $0x178] sm:$0xff]
        %v1584 = vld [vmem:[#allocation2 + $0x180] sm:$0xff]
        %v1585 = vld [vmem:[#allocation2 + $0x188] sm:$0xff]
        %v1586 = vld [vmem:[#allocation2 + $0x190] sm:$0xff]
        %v1587 = vld [vmem:[#allocation2 + $0x198] sm:$0xff]
        %v1588 = vld [vmem:[#allocation2 + $0x1a0] sm:$0xff]
        %v1589 = vld [vmem:[#allocation2 + $0x1a8] sm:$0xff]
        %v1590 = vld [vmem:[#allocation2 + $0x1b0] sm:$0xff]
        %v1591 = vld [vmem:[#allocation2 + $0x1b8] sm:$0xff]
        %v1592 = vld [vmem:[#allocation2 + $0x1c0] sm:$0xff]
        %v1593 = vld [vmem:[#allocation2 + $0x1c8] sm:$0xff]
        %v1594 = vld [vmem:[#allocation2 + $0x1d0] sm:$0xff]
        %v1595 = vld [vmem:[#allocation2 + $0x1d8] sm:$0xff]
        %v1596 = vld [vmem:[#allocation2 + $0x1e0] sm:$0xff]
        %v1597 = vld [vmem:[#allocation2 + $0x1e8] sm:$0xff]
        %v1598 = vld [vmem:[#allocation2 + $0x1f0] sm:$0xff]
        %v1599 = vld [vmem:[#allocation2 + $0x1f8] sm:$0xff]
        %v1600 = vld [vmem:[#allocation2 + $0x200] sm:$0xff]
        %v1601 = vld [vmem:[#allocation2 + $0x208] sm:$0xff]
        %v1602 = vld [vmem:[#allocation2 + $0x210] sm:$0xff]
        %v1603 = vld [vmem:[#allocation2 + $0x218] sm:$0xff]
        %v1604 = vld [vmem:[#allocation2 + $0x220] sm:$0xff]
        %v1605 = vld [vmem:[#allocation2 + $0x228] sm:$0xff]
        %v1606 = vld [vmem:[#allocation2 + $0x230] sm:$0xff]
        %v1607 = vld [vmem:[#allocation2 + $0x238] sm:$0xff]
        %v1608 = vld [vmem:[#allocation2 + $0x240] sm:$0xff]
        %v1609 = vld [vmem:[#allocation2 + $0x248] sm:$0xff]
        %v1610 = vld [vmem:[#allocation2 + $0x250] sm:$0xff]
        %v1611 = vld [vmem:[#allocation2 + $0x258] sm:$0xff]
        %v1612 = vld [vmem:[#allocation2 + $0x260] sm:$0xff]
        %v1613 = vld [vmem:[#allocation2 + $0x268] sm:$0xff]
        %v1614 = vld [vmem:[#allocation2 + $0x270] sm:$0xff]
        %v1615 = vld [vmem:[#allocation2 + $0x278] sm:$0xff]
        %v1696 = vunpack.c.l.b16 %v1536
        %v1697 = vunpack.c.h.b16 %v1536
        %v1698 = vunpack.c.l.b16 %v1537
        %v1699 = vunpack.c.h.b16 %v1537
        %v1700 = vunpack.c.l.b16 %v1538
        %v1701 = vunpack.c.h.b16 %v1538
        %v1702 = vunpack.c.l.b16 %v1539
        %v1703 = vunpack.c.h.b16 %v1539
        %v1704 = vunpack.c.l.b16 %v1540
        %v1705 = vunpack.c.h.b16 %v1540
        %v1706 = vunpack.c.l.b16 %v1541
        %v1707 = vunpack.c.h.b16 %v1541
        %v1708 = vunpack.c.l.b16 %v1542
        %v1709 = vunpack.c.h.b16 %v1542
        %v1710 = vunpack.c.l.b16 %v1543
        %v1711 = vunpack.c.h.b16 %v1543
        %v1712 = vunpack.c.l.b16 %v1544
        %v1713 = vunpack.c.h.b16 %v1544
        %v1714 = vunpack.c.l.b16 %v1545
        %v1715 = vunpack.c.h.b16 %v1545
        %v1716 = vunpack.c.l.b16 %v1546
        %v1717 = vunpack.c.h.b16 %v1546
        %v1718 = vunpack.c.l.b16 %v1547
        %v1719 = vunpack.c.h.b16 %v1547
        %v1720 = vunpack.c.l.b16 %v1548
        %v1721 = vunpack.c.h.b16 %v1548
        %v1722 = vunpack.c.l.b16 %v1549
        %v1723 = vunpack.c.h.b16 %v1549
        %v1724 = vunpack.c.l.b16 %v1550
        %v1725 = vunpack.c.h.b16 %v1550
        %v1726 = vunpack.c.l.b16 %v1551
        %v1727 = vunpack.c.h.b16 %v1551
        %v1728 = vunpack.c.l.b16 %v1552
        %v1729 = vunpack.c.h.b16 %v1552
        %v1730 = vunpack.c.l.b16 %v1553
        %v1731 = vunpack.c.h.b16 %v1553
        %v1732 = vunpack.c.l.b16 %v1554
        %v1733 = vunpack.c.h.b16 %v1554
        %v1734 = vunpack.c.l.b16 %v1555
        %v1735 = vunpack.c.h.b16 %v1555
        %v1736 = vunpack.c.l.b16 %v1556
        %v1737 = vunpack.c.h.b16 %v1556
        %v1738 = vunpack.c.l.b16 %v1557
        %v1739 = vunpack.c.h.b16 %v1557
        %v1740 = vunpack.c.l.b16 %v1558
        %v1741 = vunpack.c.h.b16 %v1558
        %v1742 = vunpack.c.l.b16 %v1559
        %v1743 = vunpack.c.h.b16 %v1559
        %v1744 = vunpack.c.l.b16 %v1560
        %v1745 = vunpack.c.h.b16 %v1560
        %v1746 = vunpack.c.l.b16 %v1561
        %v1747 = vunpack.c.h.b16 %v1561
        %v1748 = vunpack.c.l.b16 %v1562
        %v1749 = vunpack.c.h.b16 %v1562
        %v1750 = vunpack.c.l.b16 %v1563
        %v1751 = vunpack.c.h.b16 %v1563
        %v1752 = vunpack.c.l.b16 %v1564
        %v1753 = vunpack.c.h.b16 %v1564
        %v1754 = vunpack.c.l.b16 %v1565
        %v1755 = vunpack.c.h.b16 %v1565
        %v1756 = vunpack.c.l.b16 %v1566
        %v1757 = vunpack.c.h.b16 %v1566
        %v1758 = vunpack.c.l.b16 %v1567
        %v1759 = vunpack.c.h.b16 %v1567
        %v1760 = vunpack.c.l.b16 %v1568
        %v1761 = vunpack.c.h.b16 %v1568
        %v1762 = vunpack.c.l.b16 %v1569
        %v1763 = vunpack.c.h.b16 %v1569
        %v1764 = vunpack.c.l.b16 %v1570
        %v1765 = vunpack.c.h.b16 %v1570
        %v1766 = vunpack.c.l.b16 %v1571
        %v1767 = vunpack.c.h.b16 %v1571
        %v1768 = vunpack.c.l.b16 %v1572
        %v1769 = vunpack.c.h.b16 %v1572
        %v1770 = vunpack.c.l.b16 %v1573
        %v1771 = vunpack.c.h.b16 %v1573
        %v1772 = vunpack.c.l.b16 %v1574
        %v1773 = vunpack.c.h.b16 %v1574
        %v1774 = vunpack.c.l.b16 %v1575
        %v1775 = vunpack.c.h.b16 %v1575
        %v1776 = vunpack.c.l.b16 %v1576
        %v1777 = vunpack.c.h.b16 %v1576
        %v1778 = vunpack.c.l.b16 %v1577
        %v1779 = vunpack.c.h.b16 %v1577
        %v1780 = vunpack.c.l.b16 %v1578
        %v1781 = vunpack.c.h.b16 %v1578
        %v1782 = vunpack.c.l.b16 %v1579
        %v1783 = vunpack.c.h.b16 %v1579
        %v1784 = vunpack.c.l.b16 %v1580
        %v1785 = vunpack.c.h.b16 %v1580
        %v1786 = vunpack.c.l.b16 %v1581
        %v1787 = vunpack.c.h.b16 %v1581
        %v1788 = vunpack.c.l.b16 %v1582
        %v1789 = vunpack.c.h.b16 %v1582
        %v1790 = vunpack.c.l.b16 %v1583
        %v1791 = vunpack.c.h.b16 %v1583
        %v1792 = vunpack.c.l.b16 %v1584
        %v1793 = vunpack.c.h.b16 %v1584
        %v1794 = vunpack.c.l.b16 %v1585
        %v1795 = vunpack.c.h.b16 %v1585
        %v1796 = vunpack.c.l.b16 %v1586
        %v1797 = vunpack.c.h.b16 %v1586
        %v1798 = vunpack.c.l.b16 %v1587
        %v1799 = vunpack.c.h.b16 %v1587
        %v1800 = vunpack.c.l.b16 %v1588
        %v1801 = vunpack.c.h.b16 %v1588
        %v1802 = vunpack.c.l.b16 %v1589
        %v1803 = vunpack.c.h.b16 %v1589
        %v1804 = vunpack.c.l.b16 %v1590
        %v1805 = vunpack.c.h.b16 %v1590
        %v1806 = vunpack.c.l.b16 %v1591
        %v1807 = vunpack.c.h.b16 %v1591
        %v1808 = vunpack.c.l.b16 %v1592
        %v1809 = vunpack.c.h.b16 %v1592
        %v1810 = vunpack.c.l.b16 %v1593
        %v1811 = vunpack.c.h.b16 %v1593
        %v1812 = vunpack.c.l.b16 %v1594
        %v1813 = vunpack.c.h.b16 %v1594
        %v1814 = vunpack.c.l.b16 %v1595
        %v1815 = vunpack.c.h.b16 %v1595
        %v1816 = vunpack.c.l.b16 %v1596
        %v1817 = vunpack.c.h.b16 %v1596
        %v1818 = vunpack.c.l.b16 %v1597
        %v1819 = vunpack.c.h.b16 %v1597
        %v1820 = vunpack.c.l.b16 %v1598
        %v1821 = vunpack.c.h.b16 %v1598
        %v1822 = vunpack.c.l.b16 %v1599
        %v1823 = vunpack.c.h.b16 %v1599
        %v1824 = vunpack.c.l.b16 %v1600
        %v1825 = vunpack.c.h.b16 %v1600
        %v1826 = vunpack.c.l.b16 %v1601
        %v1827 = vunpack.c.h.b16 %v1601
        %v1828 = vunpack.c.l.b16 %v1602
        %v1829 = vunpack.c.h.b16 %v1602
        %v1830 = vunpack.c.l.b16 %v1603
        %v1831 = vunpack.c.h.b16 %v1603
        %v1832 = vunpack.c.l.b16 %v1604
        %v1833 = vunpack.c.h.b16 %v1604
        %v1834 = vunpack.c.l.b16 %v1605
        %v1835 = vunpack.c.h.b16 %v1605
        %v1836 = vunpack.c.l.b16 %v1606
        %v1837 = vunpack.c.h.b16 %v1606
        %v1838 = vunpack.c.l.b16 %v1607
        %v1839 = vunpack.c.h.b16 %v1607
        %v1840 = vunpack.c.l.b16 %v1608
        %v1841 = vunpack.c.h.b16 %v1608
        %v1842 = vunpack.c.l.b16 %v1609
        %v1843 = vunpack.c.h.b16 %v1609
        %v1844 = vunpack.c.l.b16 %v1610
        %v1845 = vunpack.c.h.b16 %v1610
        %v1846 = vunpack.c.l.b16 %v1611
        %v1847 = vunpack.c.h.b16 %v1611
        %v1848 = vunpack.c.l.b16 %v1612
        %v1849 = vunpack.c.h.b16 %v1612
        %v1850 = vunpack.c.l.b16 %v1613
        %v1851 = vunpack.c.h.b16 %v1613
        %v1852 = vunpack.c.l.b16 %v1614
        %v1853 = vunpack.c.h.b16 %v1614
        %v1854 = vunpack.c.l.b16 %v1615
        %v1855 = vunpack.c.h.b16 %v1615
        %v1856 = vpack.c.b16 %v1698, %v1696
        %v1857 = vpack.c.b16 %v1699, %v1697
        %v1858 = vpack.c.b16 %v1702, %v1700
        %v1859 = vpack.c.b16 %v1703, %v1701
        %v1860 = vpack.c.b16 %v1706, %v1704
        %v1861 = vpack.c.b16 %v1707, %v1705
        %v1862 = vpack.c.b16 %v1710, %v1708
        %v1863 = vpack.c.b16 %v1711, %v1709
        %v1864 = vpack.c.b16 %v1714, %v1712
        %v1865 = vpack.c.b16 %v1715, %v1713
        %v1866 = vpack.c.b16 %v1718, %v1716
        %v1867 = vpack.c.b16 %v1719, %v1717
        %v1868 = vpack.c.b16 %v1722, %v1720
        %v1869 = vpack.c.b16 %v1723, %v1721
        %v1870 = vpack.c.b16 %v1726, %v1724
        %v1871 = vpack.c.b16 %v1727, %v1725
        %v1872 = vpack.c.b16 %v1730, %v1728
        %v1873 = vpack.c.b16 %v1731, %v1729
        %v1874 = vpack.c.b16 %v1734, %v1732
        %v1875 = vpack.c.b16 %v1735, %v1733
        %v1876 = vpack.c.b16 %v1738, %v1736
        %v1877 = vpack.c.b16 %v1739, %v1737
        %v1878 = vpack.c.b16 %v1742, %v1740
        %v1879 = vpack.c.b16 %v1743, %v1741
        %v1880 = vpack.c.b16 %v1746, %v1744
        %v1881 = vpack.c.b16 %v1747, %v1745
        %v1882 = vpack.c.b16 %v1750, %v1748
        %v1883 = vpack.c.b16 %v1751, %v1749
        %v1884 = vpack.c.b16 %v1754, %v1752
        %v1885 = vpack.c.b16 %v1755, %v1753
        %v1886 = vpack.c.b16 %v1758, %v1756
        %v1887 = vpack.c.b16 %v1759, %v1757
        %v1888 = vpack.c.b16 %v1762, %v1760
        %v1889 = vpack.c.b16 %v1763, %v1761
        %v1890 = vpack.c.b16 %v1766, %v1764
        %v1891 = vpack.c.b16 %v1767, %v1765
        %v1892 = vpack.c.b16 %v1770, %v1768
        %v1893 = vpack.c.b16 %v1771, %v1769
        %v1894 = vpack.c.b16 %v1774, %v1772
        %v1895 = vpack.c.b16 %v1775, %v1773
        %v1896 = vpack.c.b16 %v1778, %v1776
        %v1897 = vpack.c.b16 %v1779, %v1777
        %v1898 = vpack.c.b16 %v1782, %v1780
        %v1899 = vpack.c.b16 %v1783, %v1781
        %v1900 = vpack.c.b16 %v1786, %v1784
        %v1901 = vpack.c.b16 %v1787, %v1785
        %v1902 = vpack.c.b16 %v1790, %v1788
        %v1903 = vpack.c.b16 %v1791, %v1789
        %v1904 = vpack.c.b16 %v1794, %v1792
        %v1905 = vpack.c.b16 %v1795, %v1793
        %v1906 = vpack.c.b16 %v1798, %v1796
        %v1907 = vpack.c.b16 %v1799, %v1797
        %v1908 = vpack.c.b16 %v1802, %v1800
        %v1909 = vpack.c.b16 %v1803, %v1801
        %v1910 = vpack.c.b16 %v1806, %v1804
        %v1911 = vpack.c.b16 %v1807, %v1805
        %v1912 = vpack.c.b16 %v1810, %v1808
        %v1913 = vpack.c.b16 %v1811, %v1809
        %v1914 = vpack.c.b16 %v1814, %v1812
        %v1915 = vpack.c.b16 %v1815, %v1813
        %v1916 = vpack.c.b16 %v1818, %v1816
        %v1917 = vpack.c.b16 %v1819, %v1817
        %v1918 = vpack.c.b16 %v1822, %v1820
        %v1919 = vpack.c.b16 %v1823, %v1821
        %v1920 = vpack.c.b16 %v1826, %v1824
        %v1921 = vpack.c.b16 %v1827, %v1825
        %v1922 = vpack.c.b16 %v1830, %v1828
        %v1923 = vpack.c.b16 %v1831, %v1829
        %v1924 = vpack.c.b16 %v1834, %v1832
        %v1925 = vpack.c.b16 %v1835, %v1833
        %v1926 = vpack.c.b16 %v1838, %v1836
        %v1927 = vpack.c.b16 %v1839, %v1837
        %v1928 = vpack.c.b16 %v1842, %v1840
        %v1929 = vpack.c.b16 %v1843, %v1841
        %v1930 = vpack.c.b16 %v1846, %v1844
        %v1931 = vpack.c.b16 %v1847, %v1845
        %v1932 = vpack.c.b16 %v1850, %v1848
        %v1933 = vpack.c.b16 %v1851, %v1849
        %v1934 = vpack.c.b16 %v1854, %v1852
        %v1935 = vpack.c.b16 %v1855, %v1853
        %2016 = vmatprep.subr.bf16.mxu0 %v1871
        %2017 = vmatpush1.bf16.msra.mxu0 %v1870
        %2018 = vmatprep.subr.bf16.mxu0 %v1869
        %2019 = vmatpush1.bf16.msra.mxu0 %v1868
        %2020 = vmatprep.subr.bf16.mxu0 %v1867
        %2021 = vmatpush1.bf16.msra.mxu0 %v1866
        %2022 = vmatprep.subr.bf16.mxu0 %v1865
        %2023 = vmatpush1.bf16.msra.mxu0 %v1864
        %2024 = vmatprep.subr.bf16.mxu0 %v1863
        %2025 = vmatpush1.bf16.msra.mxu0 %v1862
        %2026 = vmatprep.subr.bf16.mxu0 %v1861
        %2027 = vmatpush1.bf16.msra.mxu0 %v1860
        %2028 = vmatprep.subr.bf16.mxu0 %v1859
        %2029 = vmatpush1.bf16.msra.mxu0 %v1858
        %2030 = vmatprep.subr.bf16.mxu0 %v1857
        %2031 = vmatpush1.bf16.msra.mxu0 %v1856
        %2032 = vmatprep.subr.bf16.mxu0 %v1887
        %2033 = vmatpush2.bf16.msra.mxu0 %v1886
        %2034 = vmatprep.subr.bf16.mxu0 %v1885
        %2035 = vmatpush2.bf16.msra.mxu0 %v1884
        %2036 = vmatprep.subr.bf16.mxu0 %v1883
        %2037 = vmatpush2.bf16.msra.mxu0 %v1882
        %2038 = vmatprep.subr.bf16.mxu0 %v1881
        %2039 = vmatpush2.bf16.msra.mxu0 %v1880
        %2040 = vmatprep.subr.bf16.mxu0 %v1879
        %2041 = vmatpush2.bf16.msra.mxu0 %v1878
        %2042 = vmatprep.subr.bf16.mxu0 %v1877
        %2043 = vmatpush2.bf16.msra.mxu0 %v1876
        %2044 = vmatprep.subr.bf16.mxu0 %v1875
        %2045 = vmatpush2.bf16.msra.mxu0 %v1874
        %2046 = vmatprep.subr.bf16.mxu0 %v1873
        %2047 = vmatpush2.bf16.msra.mxu0 %v1872
        %2048 = vmatprep.mubr.bf16.mxu0 %v1531
        %2049 = vmatmul.mubr.bf16.gmra.mxu0 %v1527
        %v2050 = vpop.f32.mrf.mxu0
        %v2051 = vadd.f32 0.0, %v2050
        %v2052 = vpop.f32.mrf.mxu0
        %v2053 = vadd.f32 0.0, %v2052
        %v2054 = vpop.f32.mrf.mxu0
        %v2055 = vpop.f32.mrf.mxu0
        %2056 = vdwg.mxu0
        %2057 = vmatprep.subr.bf16.mxu0 %v1903
        %2058 = vmatpush1.bf16.msra.mxu0 %v1902
        %2059 = vmatprep.subr.bf16.mxu0 %v1901
        %2060 = vmatpush1.bf16.msra.mxu0 %v1900
        %2061 = vmatprep.subr.bf16.mxu0 %v1899
        %2062 = vmatpush1.bf16.msra.mxu0 %v1898
        %2063 = vmatprep.subr.bf16.mxu0 %v1897
        %2064 = vmatpush1.bf16.msra.mxu0 %v1896
        %2065 = vmatprep.subr.bf16.mxu0 %v1895
        %2066 = vmatpush1.bf16.msra.mxu0 %v1894
        %2067 = vmatprep.subr.bf16.mxu0 %v1893
        %2068 = vmatpush1.bf16.msra.mxu0 %v1892
        %2069 = vmatprep.subr.bf16.mxu0 %v1891
        %2070 = vmatpush1.bf16.msra.mxu0 %v1890
        %2071 = vmatprep.subr.bf16.mxu0 %v1889
        %2072 = vmatpush1.bf16.msra.mxu0 %v1888
        %2073 = vmatprep.subr.bf16.mxu0 %v1919
        %2074 = vmatpush2.bf16.msra.mxu0 %v1918
        %2075 = vmatprep.subr.bf16.mxu0 %v1917
        %2076 = vmatpush2.bf16.msra.mxu0 %v1916
        %2077 = vmatprep.subr.bf16.mxu0 %v1915
        %2078 = vmatpush2.bf16.msra.mxu0 %v1914
        %2079 = vmatprep.subr.bf16.mxu0 %v1913
        %2080 = vmatpush2.bf16.msra.mxu0 %v1912
        %2081 = vmatprep.subr.bf16.mxu0 %v1911
        %2082 = vmatpush2.bf16.msra.mxu0 %v1910
        %2083 = vmatprep.subr.bf16.mxu0 %v1909
        %2084 = vmatpush2.bf16.msra.mxu0 %v1908
        %2085 = vmatprep.subr.bf16.mxu0 %v1907
        %2086 = vmatpush2.bf16.msra.mxu0 %v1906
        %2087 = vmatprep.subr.bf16.mxu0 %v1905
        %2088 = vmatpush2.bf16.msra.mxu0 %v1904
        %2089 = vmatprep.mubr.bf16.mxu0 %v1534
        %2090 = vmatmul.mubr.bf16.gmra.mxu0 %v1528
        %v2091 = vpop.f32.mrf.mxu0
        %v2092 = vadd.f32 %v2051, %v2091
        %v2093 = vpop.f32.mrf.mxu0
        %v2094 = vadd.f32 %v2053, %v2093
        %v2095 = vpop.f32.mrf.mxu0
        %v2096 = vpop.f32.mrf.mxu0
        %2097 = vdwg.mxu0
        %2098 = vmatprep.subr.bf16.mxu0 %v1935
        %2099 = vmatpush1.bf16.msra.mxu0 %v1934
        %2100 = vmatprep.subr.bf16.mxu0 %v1933
        %2101 = vmatpush1.bf16.msra.mxu0 %v1932
        %2102 = vmatprep.subr.bf16.mxu0 %v1931
        %2103 = vmatpush1.bf16.msra.mxu0 %v1930
        %2104 = vmatprep.subr.bf16.mxu0 %v1929
        %2105 = vmatpush1.bf16.msra.mxu0 %v1928
        %2106 = vmatprep.subr.bf16.mxu0 %v1927
        %2107 = vmatpush1.bf16.msra.mxu0 %v1926
        %2108 = vmatprep.subr.bf16.mxu0 %v1925
        %2109 = vmatpush1.bf16.msra.mxu0 %v1924
        %2110 = vmatprep.subr.bf16.mxu0 %v1923
        %2111 = vmatpush1.bf16.msra.mxu0 %v1922
        %2112 = vmatprep.subr.bf16.mxu0 %v1921
        %2113 = vmatpush1.bf16.msra.mxu0 %v1920
        %2114 = vmatprep.subr.bf16.mxu0 0
        %2115 = vmatpush2.bf16.msra.mxu0 0
        %2116 = vmatprep.subr.bf16.mxu0 0
        %2117 = vmatpush2.bf16.msra.mxu0 0
        %2118 = vmatprep.subr.bf16.mxu0 0
        %2119 = vmatpush2.bf16.msra.mxu0 0
        %2120 = vmatprep.subr.bf16.mxu0 0
        %2121 = vmatpush2.bf16.msra.mxu0 0
        %2122 = vmatprep.subr.bf16.mxu0 0
        %2123 = vmatpush2.bf16.msra.mxu0 0
        %2124 = vmatprep.subr.bf16.mxu0 0
        %2125 = vmatpush2.bf16.msra.mxu0 0
        %2126 = vmatprep.subr.bf16.mxu0 0
        %2127 = vmatpush2.bf16.msra.mxu0 0
        %2128 = vmatprep.subr.bf16.mxu0 0
        %2129 = vmatpush2.bf16.msra.mxu0 0
        %2130 = vmatprep.mubr.bf16.mxu0 0
        %2131 = vmatmul.mubr.bf16.gmra.mxu0 %v1529
        %v2132 = vpop.f32.mrf.mxu0
        %v2133 = vadd.f32 %v2092, %v2132
        %v2134 = vpop.f32.mrf.mxu0
        %v2135 = vadd.f32 %v2094, %v2134
        %v2136 = vpop.f32.mrf.mxu0
        %v2137 = vpop.f32.mrf.mxu0
        %2138 = vdwg.mxu0
        %v2140 = vrot.slane %v1529, 4
        %v2141 = vrot.slane %v1534, 4
        %v2142 = vrot.slane %v2140, 4
        %2146 = vmatprep.subr.bf16.mxu0 %v1871
        %2147 = vmatpush1.bf16.msra.mxu0 %v1870
        %2148 = vmatprep.subr.bf16.mxu0 %v1869
        %2149 = vmatpush1.bf16.msra.mxu0 %v1868
        %2150 = vmatprep.subr.bf16.mxu0 %v1867
        %2151 = vmatpush1.bf16.msra.mxu0 %v1866
        %2152 = vmatprep.subr.bf16.mxu0 %v1865
        %2153 = vmatpush1.bf16.msra.mxu0 %v1864
        %2154 = vmatprep.subr.bf16.mxu0 %v1863
        %2155 = vmatpush1.bf16.msra.mxu0 %v1862
        %2156 = vmatprep.subr.bf16.mxu0 %v1861
        %2157 = vmatpush1.bf16.msra.mxu0 %v1860
        %2158 = vmatprep.subr.bf16.mxu0 %v1859
        %2159 = vmatpush1.bf16.msra.mxu0 %v1858
        %2160 = vmatprep.subr.bf16.mxu0 %v1857
        %2161 = vmatpush1.bf16.msra.mxu0 %v1856
        %2162 = vmatprep.subr.bf16.mxu0 %v1887
        %2163 = vmatpush2.bf16.msra.mxu0 %v1886
        %2164 = vmatprep.subr.bf16.mxu0 %v1885
        %2165 = vmatpush2.bf16.msra.mxu0 %v1884
        %2166 = vmatprep.subr.bf16.mxu0 %v1883
        %2167 = vmatpush2.bf16.msra.mxu0 %v1882
        %2168 = vmatprep.subr.bf16.mxu0 %v1881
        %2169 = vmatpush2.bf16.msra.mxu0 %v1880
        %2170 = vmatprep.subr.bf16.mxu0 %v1879
        %2171 = vmatpush2.bf16.msra.mxu0 %v1878
        %2172 = vmatprep.subr.bf16.mxu0 %v1877
        %2173 = vmatpush2.bf16.msra.mxu0 %v1876
        %2174 = vmatprep.subr.bf16.mxu0 %v1875
        %2175 = vmatpush2.bf16.msra.mxu0 %v1874
        %2176 = vmatprep.subr.bf16.mxu0 %v1873
        %2177 = vmatpush2.bf16.msra.mxu0 %v1872
        %2178 = vmatprep.mubr.bf16.mxu0 %v2141
        %2179 = vmatmul.mubr.bf16.gmra.mxu0 %v1531
        %v2180 = vpop.f32.mrf.mxu0
        %v2181 = vadd.f32 0.0, %v2180
        %v2182 = vpop.f32.mrf.mxu0
        %v2183 = vadd.f32 0.0, %v2182
        %v2184 = vpop.f32.mrf.mxu0
        %v2185 = vpop.f32.mrf.mxu0
        %2186 = vdwg.mxu0
        %2187 = vmatprep.subr.bf16.mxu0 %v1903
        %2188 = vmatpush1.bf16.msra.mxu0 %v1902
        %2189 = vmatprep.subr.bf16.mxu0 %v1901
        %2190 = vmatpush1.bf16.msra.mxu0 %v1900
        %2191 = vmatprep.subr.bf16.mxu0 %v1899
        %2192 = vmatpush1.bf16.msra.mxu0 %v1898
        %2193 = vmatprep.subr.bf16.mxu0 %v1897
        %2194 = vmatpush1.bf16.msra.mxu0 %v1896
        %2195 = vmatprep.subr.bf16.mxu0 %v1895
        %2196 = vmatpush1.bf16.msra.mxu0 %v1894
        %2197 = vmatprep.subr.bf16.mxu0 %v1893
        %2198 = vmatpush1.bf16.msra.mxu0 %v1892
        %2199 = vmatprep.subr.bf16.mxu0 %v1891
        %2200 = vmatpush1.bf16.msra.mxu0 %v1890
        %2201 = vmatprep.subr.bf16.mxu0 %v1889
        %2202 = vmatpush1.bf16.msra.mxu0 %v1888
        %2203 = vmatprep.subr.bf16.mxu0 %v1919
        %2204 = vmatpush2.bf16.msra.mxu0 %v1918
        %2205 = vmatprep.subr.bf16.mxu0 %v1917
        %2206 = vmatpush2.bf16.msra.mxu0 %v1916
        %2207 = vmatprep.subr.bf16.mxu0 %v1915
        %2208 = vmatpush2.bf16.msra.mxu0 %v1914
        %2209 = vmatprep.subr.bf16.mxu0 %v1913
        %2210 = vmatpush2.bf16.msra.mxu0 %v1912
        %2211 = vmatprep.subr.bf16.mxu0 %v1911
        %2212 = vmatpush2.bf16.msra.mxu0 %v1910
        %2213 = vmatprep.subr.bf16.mxu0 %v1909
        %2214 = vmatpush2.bf16.msra.mxu0 %v1908
        %2215 = vmatprep.subr.bf16.mxu0 %v1907
        %2216 = vmatpush2.bf16.msra.mxu0 %v1906
        %2217 = vmatprep.subr.bf16.mxu0 %v1905
        %2218 = vmatpush2.bf16.msra.mxu0 %v1904
        %2219 = vmatprep.mubr.bf16.mxu0 %v2142
        %2220 = vmatmul.mubr.bf16.gmra.mxu0 %v1534
        %v2221 = vpop.f32.mrf.mxu0
        %v2222 = vadd.f32 %v2181, %v2221
        %v2223 = vpop.f32.mrf.mxu0
        %v2224 = vadd.f32 %v2183, %v2223
        %v2225 = vpop.f32.mrf.mxu0
        %v2226 = vpop.f32.mrf.mxu0
        %2227 = vdwg.mxu0
        %2228 = vmatprep.subr.bf16.mxu0 %v1935
        %2229 = vmatpush1.bf16.msra.mxu0 %v1934
        %2230 = vmatprep.subr.bf16.mxu0 %v1933
        %2231 = vmatpush1.bf16.msra.mxu0 %v1932
        %2232 = vmatprep.subr.bf16.mxu0 %v1931
        %2233 = vmatpush1.bf16.msra.mxu0 %v1930
        %2234 = vmatprep.subr.bf16.mxu0 %v1929
        %2235 = vmatpush1.bf16.msra.mxu0 %v1928
        %2236 = vmatprep.subr.bf16.mxu0 %v1927
        %2237 = vmatpush1.bf16.msra.mxu0 %v1926
        %2238 = vmatprep.subr.bf16.mxu0 %v1925
        %2239 = vmatpush1.bf16.msra.mxu0 %v1924
        %2240 = vmatprep.subr.bf16.mxu0 %v1923
        %2241 = vmatpush1.bf16.msra.mxu0 %v1922
        %2242 = vmatprep.subr.bf16.mxu0 %v1921
        %2243 = vmatpush1.bf16.msra.mxu0 %v1920
        %2244 = vmatprep.subr.bf16.mxu0 0
        %2245 = vmatpush2.bf16.msra.mxu0 0
        %2246 = vmatprep.subr.bf16.mxu0 0
        %2247 = vmatpush2.bf16.msra.mxu0 0
        %2248 = vmatprep.subr.bf16.mxu0 0
        %2249 = vmatpush2.bf16.msra.mxu0 0
        %2250 = vmatprep.subr.bf16.mxu0 0
        %2251 = vmatpush2.bf16.msra.mxu0 0
        %2252 = vmatprep.subr.bf16.mxu0 0
        %2253 = vmatpush2.bf16.msra.mxu0 0
        %2254 = vmatprep.subr.bf16.mxu0 0
        %2255 = vmatpush2.bf16.msra.mxu0 0
        %2256 = vmatprep.subr.bf16.mxu0 0
        %2257 = vmatpush2.bf16.msra.mxu0 0
        %2258 = vmatprep.subr.bf16.mxu0 0
        %2259 = vmatpush2.bf16.msra.mxu0 0
        %2260 = vmatprep.mubr.bf16.mxu0 0
        %2261 = vmatmul.mubr.bf16.gmra.mxu0 %v2140
        %v2262 = vpop.f32.mrf.mxu0
        %v2263 = vadd.f32 %v2222, %v2262
        %v2264 = vpop.f32.mrf.mxu0
        %v2265 = vadd.f32 %v2224, %v2264
        %v2266 = vpop.f32.mrf.mxu0
        %v2267 = vpop.f32.mrf.mxu0
        %2268 = vdwg.mxu0
        %v2269 = vmax.f32 %v2133, %v2263
        %v2270 = vmax.f32 %v2135, %v2265
        %v2271 = vmax.f32 %v2269, %v2270
        %v2272 = vld [vmem:[#allocation5] sm:$0x1]
        %v2274 = vlaneseq
        %v2275 = vshrl.u32 %v2274, 7
        %v2276 = vsub.s32 0, %v2275
        %v2277 = vrot.slane %v2272, %v2276
        %v2279 = vadd.f32 %v2271, %v2277
        %v2280 = vmax.f32 %v2279, 0.0
        %v2281 = vpack.c.bf16 %v2280, %v2280
        %v2283 = vshrl.u32 %v2281, 16
        %v2287 = vrot.slane %v2281, 1
        %v2289 = vrot.slane %v2283, 1
        %v2291 = vrot.slane %v2281, 2
        %v2293 = vld [vmem:[#allocation7] sm:$0xf]
        %v2294 = vld [vmem:[#allocation7 + $0x4] sm:$0xf]
        %v2295 = vld [vmem:[#allocation7 + $0x8] sm:$0xf]
        %v2296 = vld [vmem:[#allocation7 + $0xc] sm:$0xf]
        %v2297 = vld [vmem:[#allocation7 + $0x10] sm:$0xf]
        %v2298 = vld [vmem:[#allocation7 + $0x14] sm:$0xf]
        %v2299 = vld [vmem:[#allocation7 + $0x18] sm:$0xf]
        %v2300 = vld [vmem:[#allocation7 + $0x1c] sm:$0xf]
        %v2301 = vld [vmem:[#allocation7 + $0x20] sm:$0xf]
        %v2302 = vld [vmem:[#allocation7 + $0x24] sm:$0xf]
        %v2303 = vld [vmem:[#allocation7 + $0x28] sm:$0xf]
        %v2304 = vld [vmem:[#allocation7 + $0x2c] sm:$0xf]
        %v2305 = vld [vmem:[#allocation7 + $0x30] sm:$0xf]
        %v2306 = vld [vmem:[#allocation7 + $0x34] sm:$0xf]
        %v2307 = vld [vmem:[#allocation7 + $0x38] sm:$0xf]
        %v2308 = vld [vmem:[#allocation7 + $0x3c] sm:$0xf]
        %v2309 = vld [vmem:[#allocation7 + $0x40] sm:$0xf]
        %v2310 = vld [vmem:[#allocation7 + $0x44] sm:$0xf]
        %v2311 = vld [vmem:[#allocation7 + $0x48] sm:$0xf]
        %v2312 = vld [vmem:[#allocation7 + $0x4c] sm:$0xf]
        %v2313 = vld [vmem:[#allocation7 + $0x50] sm:$0xf]
        %v2314 = vld [vmem:[#allocation7 + $0x54] sm:$0xf]
        %v2315 = vld [vmem:[#allocation7 + $0x58] sm:$0xf]
        %v2316 = vld [vmem:[#allocation7 + $0x5c] sm:$0xf]
        %v2317 = vld [vmem:[#allocation7 + $0x60] sm:$0xf]
        %v2318 = vld [vmem:[#allocation7 + $0x64] sm:$0xf]
        %v2319 = vld [vmem:[#allocation7 + $0x68] sm:$0xf]
        %v2320 = vld [vmem:[#allocation7 + $0x6c] sm:$0xf]
        %v2321 = vld [vmem:[#allocation7 + $0x70] sm:$0xf]
        %v2322 = vld [vmem:[#allocation7 + $0x74] sm:$0xf]
        %v2323 = vld [vmem:[#allocation7 + $0x78] sm:$0xf]
        %v2324 = vld [vmem:[#allocation7 + $0x7c] sm:$0xf]
        %v2325 = vld [vmem:[#allocation7 + $0x80] sm:$0xf]
        %v2326 = vld [vmem:[#allocation7 + $0x84] sm:$0xf]
        %v2327 = vld [vmem:[#allocation7 + $0x88] sm:$0xf]
        %v2328 = vld [vmem:[#allocation7 + $0x8c] sm:$0xf]
        %v2329 = vld [vmem:[#allocation7 + $0x90] sm:$0xf]
        %v2330 = vld [vmem:[#allocation7 + $0x94] sm:$0xf]
        %v2331 = vld [vmem:[#allocation7 + $0x98] sm:$0xf]
        %v2332 = vld [vmem:[#allocation7 + $0x9c] sm:$0xf]
        %v2333 = vld [vmem:[#allocation7 + $0xa0] sm:$0xf]
        %v2334 = vld [vmem:[#allocation7 + $0xa4] sm:$0xf]
        %v2335 = vld [vmem:[#allocation7 + $0xa8] sm:$0xf]
        %v2336 = vld [vmem:[#allocation7 + $0xac] sm:$0xf]
        %v2337 = vld [vmem:[#allocation7 + $0xb0] sm:$0xf]
        %v2338 = vld [vmem:[#allocation7 + $0xb4] sm:$0xf]
        %v2339 = vld [vmem:[#allocation7 + $0xb8] sm:$0xf]
        %v2340 = vld [vmem:[#allocation7 + $0xbc] sm:$0xf]
        %v2341 = vld [vmem:[#allocation7 + $0xc0] sm:$0xf]
        %v2342 = vld [vmem:[#allocation7 + $0xc4] sm:$0xf]
        %v2343 = vld [vmem:[#allocation7 + $0xc8] sm:$0xf]
        %v2344 = vld [vmem:[#allocation7 + $0xcc] sm:$0xf]
        %v2345 = vld [vmem:[#allocation7 + $0xd0] sm:$0xf]
        %v2346 = vld [vmem:[#allocation7 + $0xd4] sm:$0xf]
        %v2347 = vld [vmem:[#allocation7 + $0xd8] sm:$0xf]
        %v2348 = vld [vmem:[#allocation7 + $0xdc] sm:$0xf]
        %v2349 = vld [vmem:[#allocation7 + $0xe0] sm:$0xf]
        %v2350 = vld [vmem:[#allocation7 + $0xe4] sm:$0xf]
        %v2351 = vld [vmem:[#allocation7 + $0xe8] sm:$0xf]
        %v2352 = vld [vmem:[#allocation7 + $0xec] sm:$0xf]
        %v2353 = vld [vmem:[#allocation7 + $0xf0] sm:$0xf]
        %v2354 = vld [vmem:[#allocation7 + $0xf4] sm:$0xf]
        %v2355 = vld [vmem:[#allocation7 + $0xf8] sm:$0xf]
        %v2356 = vld [vmem:[#allocation7 + $0xfc] sm:$0xf]
        %v2357 = vld [vmem:[#allocation7 + $0x100] sm:$0xf]
        %v2358 = vld [vmem:[#allocation7 + $0x104] sm:$0xf]
        %v2359 = vld [vmem:[#allocation7 + $0x108] sm:$0xf]
        %v2360 = vld [vmem:[#allocation7 + $0x10c] sm:$0xf]
        %v2361 = vld [vmem:[#allocation7 + $0x110] sm:$0xf]
        %v2362 = vld [vmem:[#allocation7 + $0x114] sm:$0xf]
        %v2363 = vld [vmem:[#allocation7 + $0x118] sm:$0xf]
        %v2364 = vld [vmem:[#allocation7 + $0x11c] sm:$0xf]
        %v2365 = vld [vmem:[#allocation7 + $0x120] sm:$0xf]
        %v2366 = vld [vmem:[#allocation7 + $0x124] sm:$0xf]
        %v2367 = vld [vmem:[#allocation7 + $0x128] sm:$0xf]
        %v2368 = vld [vmem:[#allocation7 + $0x12c] sm:$0xf]
        %v2369 = vld [vmem:[#allocation7 + $0x130] sm:$0xf]
        %v2370 = vld [vmem:[#allocation7 + $0x134] sm:$0xf]
        %v2371 = vld [vmem:[#allocation7 + $0x138] sm:$0xf]
        %v2372 = vld [vmem:[#allocation7 + $0x13c] sm:$0xf]
        %v2373 = vld [vmem:[#allocation8] sm:$0x1]
        %v2454 = vunpack.c.l.b16 %v2293
        %v2455 = vunpack.c.l.b16 %v2294
        %v2456 = vunpack.c.l.b16 %v2295
        %v2457 = vunpack.c.l.b16 %v2296
        %v2458 = vunpack.c.l.b16 %v2297
        %v2459 = vunpack.c.l.b16 %v2298
        %v2460 = vunpack.c.l.b16 %v2299
        %v2461 = vunpack.c.l.b16 %v2300
        %v2462 = vunpack.c.l.b16 %v2301
        %v2463 = vunpack.c.l.b16 %v2302
        %v2464 = vunpack.c.l.b16 %v2303
        %v2465 = vunpack.c.l.b16 %v2304
        %v2466 = vunpack.c.l.b16 %v2305
        %v2467 = vunpack.c.l.b16 %v2306
        %v2468 = vunpack.c.l.b16 %v2307
        %v2469 = vunpack.c.l.b16 %v2308
        %v2470 = vunpack.c.l.b16 %v2309
        %v2471 = vunpack.c.l.b16 %v2310
        %v2472 = vunpack.c.l.b16 %v2311
        %v2473 = vunpack.c.l.b16 %v2312
        %v2474 = vunpack.c.l.b16 %v2313
        %v2475 = vunpack.c.l.b16 %v2314
        %v2476 = vunpack.c.l.b16 %v2315
        %v2477 = vunpack.c.l.b16 %v2316
        %v2478 = vunpack.c.l.b16 %v2317
        %v2479 = vunpack.c.l.b16 %v2318
        %v2480 = vunpack.c.l.b16 %v2319
        %v2481 = vunpack.c.l.b16 %v2320
        %v2482 = vunpack.c.l.b16 %v2321
        %v2483 = vunpack.c.l.b16 %v2322
        %v2484 = vunpack.c.l.b16 %v2323
        %v2485 = vunpack.c.l.b16 %v2324
        %v2486 = vunpack.c.l.b16 %v2325
        %v2487 = vunpack.c.l.b16 %v2326
        %v2488 = vunpack.c.l.b16 %v2327
        %v2489 = vunpack.c.l.b16 %v2328
        %v2490 = vunpack.c.l.b16 %v2329
        %v2491 = vunpack.c.l.b16 %v2330
        %v2492 = vunpack.c.l.b16 %v2331
        %v2493 = vunpack.c.l.b16 %v2332
        %v2494 = vunpack.c.l.b16 %v2333
        %v2495 = vunpack.c.l.b16 %v2334
        %v2496 = vunpack.c.l.b16 %v2335
        %v2497 = vunpack.c.l.b16 %v2336
        %v2498 = vunpack.c.l.b16 %v2337
        %v2499 = vunpack.c.l.b16 %v2338
        %v2500 = vunpack.c.l.b16 %v2339
        %v2501 = vunpack.c.l.b16 %v2340
        %v2502 = vunpack.c.l.b16 %v2341
        %v2503 = vunpack.c.l.b16 %v2342
        %v2504 = vunpack.c.l.b16 %v2343
        %v2505 = vunpack.c.l.b16 %v2344
        %v2506 = vunpack.c.l.b16 %v2345
        %v2507 = vunpack.c.l.b16 %v2346
        %v2508 = vunpack.c.l.b16 %v2347
        %v2509 = vunpack.c.l.b16 %v2348
        %v2510 = vunpack.c.l.b16 %v2349
        %v2511 = vunpack.c.l.b16 %v2350
        %v2512 = vunpack.c.l.b16 %v2351
        %v2513 = vunpack.c.l.b16 %v2352
        %v2514 = vunpack.c.l.b16 %v2353
        %v2515 = vunpack.c.l.b16 %v2354
        %v2516 = vunpack.c.l.b16 %v2355
        %v2517 = vunpack.c.l.b16 %v2356
        %v2518 = vunpack.c.l.b16 %v2357
        %v2519 = vunpack.c.l.b16 %v2358
        %v2520 = vunpack.c.l.b16 %v2359
        %v2521 = vunpack.c.l.b16 %v2360
        %v2522 = vunpack.c.l.b16 %v2361
        %v2523 = vunpack.c.l.b16 %v2362
        %v2524 = vunpack.c.l.b16 %v2363
        %v2525 = vunpack.c.l.b16 %v2364
        %v2526 = vunpack.c.l.b16 %v2365
        %v2527 = vunpack.c.l.b16 %v2366
        %v2528 = vunpack.c.l.b16 %v2367
        %v2529 = vunpack.c.l.b16 %v2368
        %v2530 = vunpack.c.l.b16 %v2369
        %v2531 = vunpack.c.l.b16 %v2370
        %v2532 = vunpack.c.l.b16 %v2371
        %v2533 = vunpack.c.l.b16 %v2372
        %v2534 = vpack.c.b16 %v2455, %v2454
        %v2535 = vpack.c.b16 %v2457, %v2456
        %v2536 = vpack.c.b16 %v2459, %v2458
        %v2537 = vpack.c.b16 %v2461, %v2460
        %v2538 = vpack.c.b16 %v2463, %v2462
        %v2539 = vpack.c.b16 %v2465, %v2464
        %v2540 = vpack.c.b16 %v2467, %v2466
        %v2541 = vpack.c.b16 %v2469, %v2468
        %v2542 = vpack.c.b16 %v2471, %v2470
        %v2543 = vpack.c.b16 %v2473, %v2472
        %v2544 = vpack.c.b16 %v2475, %v2474
        %v2545 = vpack.c.b16 %v2477, %v2476
        %v2546 = vpack.c.b16 %v2479, %v2478
        %v2547 = vpack.c.b16 %v2481, %v2480
        %v2548 = vpack.c.b16 %v2483, %v2482
        %v2549 = vpack.c.b16 %v2485, %v2484
        %v2550 = vpack.c.b16 %v2487, %v2486
        %v2551 = vpack.c.b16 %v2489, %v2488
        %v2552 = vpack.c.b16 %v2491, %v2490
        %v2553 = vpack.c.b16 %v2493, %v2492
        %v2554 = vpack.c.b16 %v2495, %v2494
        %v2555 = vpack.c.b16 %v2497, %v2496
        %v2556 = vpack.c.b16 %v2499, %v2498
        %v2557 = vpack.c.b16 %v2501, %v2500
        %v2558 = vpack.c.b16 %v2503, %v2502
        %v2559 = vpack.c.b16 %v2505, %v2504
        %v2560 = vpack.c.b16 %v2507, %v2506
        %v2561 = vpack.c.b16 %v2509, %v2508
        %v2562 = vpack.c.b16 %v2511, %v2510
        %v2563 = vpack.c.b16 %v2513, %v2512
        %v2564 = vpack.c.b16 %v2515, %v2514
        %v2565 = vpack.c.b16 %v2517, %v2516
        %v2566 = vpack.c.b16 %v2519, %v2518
        %v2567 = vpack.c.b16 %v2521, %v2520
        %v2568 = vpack.c.b16 %v2523, %v2522
        %v2569 = vpack.c.b16 %v2525, %v2524
        %v2570 = vpack.c.b16 %v2527, %v2526
        %v2571 = vpack.c.b16 %v2529, %v2528
        %v2572 = vpack.c.b16 %v2531, %v2530
        %v2573 = vpack.c.b16 %v2533, %v2532
        %2614 = vmatprep.subr.bf16.mxu0 0
        %2615 = vmatpush1.bf16.msra.mxu0 %v2541
        %2616 = vmatprep.subr.bf16.mxu0 0
        %2617 = vmatpush1.bf16.msra.mxu0 %v2540
        %2618 = vmatprep.subr.bf16.mxu0 0
        %2619 = vmatpush1.bf16.msra.mxu0 %v2539
        %2620 = vmatprep.subr.bf16.mxu0 0
        %2621 = vmatpush1.bf16.msra.mxu0 %v2538
        %2622 = vmatprep.subr.bf16.mxu0 0
        %2623 = vmatpush1.bf16.msra.mxu0 %v2537
        %2624 = vmatprep.subr.bf16.mxu0 0
        %2625 = vmatpush1.bf16.msra.mxu0 %v2536
        %2626 = vmatprep.subr.bf16.mxu0 0
        %2627 = vmatpush1.bf16.msra.mxu0 %v2535
        %2628 = vmatprep.subr.bf16.mxu0 0
        %2629 = vmatpush1.bf16.msra.mxu0 %v2534
        %2630 = vmatprep.subr.bf16.mxu0 0
        %2631 = vmatpush2.bf16.msra.mxu0 %v2549
        %2632 = vmatprep.subr.bf16.mxu0 0
        %2633 = vmatpush2.bf16.msra.mxu0 %v2548
        %2634 = vmatprep.subr.bf16.mxu0 0
        %2635 = vmatpush2.bf16.msra.mxu0 %v2547
        %2636 = vmatprep.subr.bf16.mxu0 0
        %2637 = vmatpush2.bf16.msra.mxu0 %v2546
        %2638 = vmatprep.subr.bf16.mxu0 0
        %2639 = vmatpush2.bf16.msra.mxu0 %v2545
        %2640 = vmatprep.subr.bf16.mxu0 0
        %2641 = vmatpush2.bf16.msra.mxu0 %v2544
        %2642 = vmatprep.subr.bf16.mxu0 0
        %2643 = vmatpush2.bf16.msra.mxu0 %v2543
        %2644 = vmatprep.subr.bf16.mxu0 0
        %2645 = vmatpush2.bf16.msra.mxu0 %v2542
        %2646 = vmatprep.mubr.bf16.mxu0 %v2283
        %2647 = vmatmul.mubr.bf16.gmra.mxu0 %v2281
        %v2648 = vpop.f32.mrf.mxu0
        %v2649 = vadd.f32 %v2373, %v2648
        %v2650 = vpop.f32.mrf.mxu0
        %v2651 = vpop.f32.mrf.mxu0
        %v2652 = vpop.f32.mrf.mxu0
        %2653 = vdwg.mxu0
        %2654 = vmatprep.subr.bf16.mxu0 0
        %2655 = vmatpush1.bf16.msra.mxu0 %v2557
        %2656 = vmatprep.subr.bf16.mxu0 0
        %2657 = vmatpush1.bf16.msra.mxu0 %v2556
        %2658 = vmatprep.subr.bf16.mxu0 0
        %2659 = vmatpush1.bf16.msra.mxu0 %v2555
        %2660 = vmatprep.subr.bf16.mxu0 0
        %2661 = vmatpush1.bf16.msra.mxu0 %v2554
        %2662 = vmatprep.subr.bf16.mxu0 0
        %2663 = vmatpush1.bf16.msra.mxu0 %v2553
        %2664 = vmatprep.subr.bf16.mxu0 0
        %2665 = vmatpush1.bf16.msra.mxu0 %v2552
        %2666 = vmatprep.subr.bf16.mxu0 0
        %2667 = vmatpush1.bf16.msra.mxu0 %v2551
        %2668 = vmatprep.subr.bf16.mxu0 0
        %2669 = vmatpush1.bf16.msra.mxu0 %v2550
        %2670 = vmatprep.subr.bf16.mxu0 0
        %2671 = vmatpush2.bf16.msra.mxu0 %v2565
        %2672 = vmatprep.subr.bf16.mxu0 0
        %2673 = vmatpush2.bf16.msra.mxu0 %v2564
        %2674 = vmatprep.subr.bf16.mxu0 0
        %2675 = vmatpush2.bf16.msra.mxu0 %v2563
        %2676 = vmatprep.subr.bf16.mxu0 0
        %2677 = vmatpush2.bf16.msra.mxu0 %v2562
        %2678 = vmatprep.subr.bf16.mxu0 0
        %2679 = vmatpush2.bf16.msra.mxu0 %v2561
        %2680 = vmatprep.subr.bf16.mxu0 0
        %2681 = vmatpush2.bf16.msra.mxu0 %v2560
        %2682 = vmatprep.subr.bf16.mxu0 0
        %2683 = vmatpush2.bf16.msra.mxu0 %v2559
        %2684 = vmatprep.subr.bf16.mxu0 0
        %2685 = vmatpush2.bf16.msra.mxu0 %v2558
        %2686 = vmatprep.mubr.bf16.mxu0 %v2289
        %2687 = vmatmul.mubr.bf16.gmra.mxu0 %v2287
        %v2688 = vpop.f32.mrf.mxu0
        %v2689 = vadd.f32 %v2649, %v2688
        %v2690 = vpop.f32.mrf.mxu0
        %v2691 = vpop.f32.mrf.mxu0
        %v2692 = vpop.f32.mrf.mxu0
        %2693 = vdwg.mxu0
        %2694 = vmatprep.subr.bf16.mxu0 0
        %2695 = vmatpush1.bf16.msra.mxu0 %v2573
        %2696 = vmatprep.subr.bf16.mxu0 0
        %2697 = vmatpush1.bf16.msra.mxu0 %v2572
        %2698 = vmatprep.subr.bf16.mxu0 0
        %2699 = vmatpush1.bf16.msra.mxu0 %v2571
        %2700 = vmatprep.subr.bf16.mxu0 0
        %2701 = vmatpush1.bf16.msra.mxu0 %v2570
        %2702 = vmatprep.subr.bf16.mxu0 0
        %2703 = vmatpush1.bf16.msra.mxu0 %v2569
        %2704 = vmatprep.subr.bf16.mxu0 0
        %2705 = vmatpush1.bf16.msra.mxu0 %v2568
        %2706 = vmatprep.subr.bf16.mxu0 0
        %2707 = vmatpush1.bf16.msra.mxu0 %v2567
        %2708 = vmatprep.subr.bf16.mxu0 0
        %2709 = vmatpush1.bf16.msra.mxu0 %v2566
        %2710 = vmatprep.subr.bf16.mxu0 0
        %2711 = vmatpush2.bf16.msra.mxu0 0
        %2712 = vmatprep.subr.bf16.mxu0 0
        %2713 = vmatpush2.bf16.msra.mxu0 0
        %2714 = vmatprep.subr.bf16.mxu0 0
        %2715 = vmatpush2.bf16.msra.mxu0 0
        %2716 = vmatprep.subr.bf16.mxu0 0
        %2717 = vmatpush2.bf16.msra.mxu0 0
        %2718 = vmatprep.subr.bf16.mxu0 0
        %2719 = vmatpush2.bf16.msra.mxu0 0
        %2720 = vmatprep.subr.bf16.mxu0 0
        %2721 = vmatpush2.bf16.msra.mxu0 0
        %2722 = vmatprep.subr.bf16.mxu0 0
        %2723 = vmatpush2.bf16.msra.mxu0 0
        %2724 = vmatprep.subr.bf16.mxu0 0
        %2725 = vmatpush2.bf16.msra.mxu0 0
        %2726 = vmatprep.mubr.bf16.mxu0 0
        %2727 = vmatmul.mubr.bf16.gmra.mxu0 %v2291
        %v2728 = vpop.f32.mrf.mxu0
        %v2729 = vadd.f32 %v2689, %v2728
        %v2730 = vpop.f32.mrf.mxu0
        %v2731 = vpop.f32.mrf.mxu0
        %v2732 = vpop.f32.mrf.mxu0
        %2733 = vdwg.mxu0
        %v2734 = vmax.f32 %v2729, 0.0
        %v2735 = vpack.c.bf16 %v2734, %v2734
        %v2736 = vld [vmem:[%s9] sm:$0xf]
        %v2737 = vld [vmem:[%s9 + $0x4] sm:$0xf]
        %v2738 = vld [vmem:[%s9 + $0x8] sm:$0xf]
        %v2739 = vld [vmem:[%s9 + $0xc] sm:$0xf]
        %v2740 = vld [vmem:[%s9 + $0x10] sm:$0xf]
        %v2741 = vld [vmem:[%s9 + $0x14] sm:$0xf]
        %v2742 = vld [vmem:[%s9 + $0x18] sm:$0xf]
        %v2743 = vld [vmem:[%s9 + $0x1c] sm:$0xf]
        %v2744 = vld [vmem:[%s9 + $0x20] sm:$0xf]
        %v2745 = vld [vmem:[%s9 + $0x24] sm:$0xf]
        %v2746 = vld [vmem:[%s9 + $0x28] sm:$0xf]
        %v2747 = vld [vmem:[%s9 + $0x2c] sm:$0xf]
        %v2748 = vld [vmem:[%s9 + $0x30] sm:$0xf]
        %v2749 = vld [vmem:[%s9 + $0x34] sm:$0xf]
        %v2750 = vld [vmem:[%s9 + $0x38] sm:$0xf]
        %v2751 = vld [vmem:[%s9 + $0x3c] sm:$0xf]
        %v2752 = vld [vmem:[#allocation10] sm:$0x1]
        %v2769 = vunpack.c.l.b16 %v2736
        %v2770 = vunpack.c.l.b16 %v2737
        %v2771 = vunpack.c.l.b16 %v2738
        %v2772 = vunpack.c.l.b16 %v2739
        %v2773 = vunpack.c.l.b16 %v2740
        %v2774 = vunpack.c.l.b16 %v2741
        %v2775 = vunpack.c.l.b16 %v2742
        %v2776 = vunpack.c.l.b16 %v2743
        %v2777 = vunpack.c.l.b16 %v2744
        %v2778 = vunpack.c.l.b16 %v2745
        %v2779 = vunpack.c.l.b16 %v2746
        %v2780 = vunpack.c.l.b16 %v2747
        %v2781 = vunpack.c.l.b16 %v2748
        %v2782 = vunpack.c.l.b16 %v2749
        %v2783 = vunpack.c.l.b16 %v2750
        %v2784 = vunpack.c.l.b16 %v2751
        %v2785 = vpack.c.b16 %v2770, %v2769
        %v2786 = vpack.c.b16 %v2772, %v2771
        %v2787 = vpack.c.b16 %v2774, %v2773
        %v2788 = vpack.c.b16 %v2776, %v2775
        %v2789 = vpack.c.b16 %v2778, %v2777
        %v2790 = vpack.c.b16 %v2780, %v2779
        %v2791 = vpack.c.b16 %v2782, %v2781
        %v2792 = vpack.c.b16 %v2784, %v2783
        %2801 = vmatprep.subr.bf16.mxu0 0
        %2802 = vmatpush1.bf16.msra.mxu0 %v2792
        %2803 = vmatprep.subr.bf16.mxu0 0
        %2804 = vmatpush1.bf16.msra.mxu0 %v2791
        %2805 = vmatprep.subr.bf16.mxu0 0
        %2806 = vmatpush1.bf16.msra.mxu0 %v2790
        %2807 = vmatprep.subr.bf16.mxu0 0
        %2808 = vmatpush1.bf16.msra.mxu0 %v2789
        %2809 = vmatprep.subr.bf16.mxu0 0
        %2810 = vmatpush1.bf16.msra.mxu0 %v2788
        %2811 = vmatprep.subr.bf16.mxu0 0
        %2812 = vmatpush1.bf16.msra.mxu0 %v2787
        %2813 = vmatprep.subr.bf16.mxu0 0
        %2814 = vmatpush1.bf16.msra.mxu0 %v2786
        %2815 = vmatprep.subr.bf16.mxu0 0
        %2816 = vmatpush1.bf16.msra.mxu0 %v2785
        %2817 = vmatprep.subr.bf16.mxu0 0
        %2818 = vmatpush2.bf16.msra.mxu0 0
        %2819 = vmatprep.subr.bf16.mxu0 0
        %2820 = vmatpush2.bf16.msra.mxu0 0
        %2821 = vmatprep.subr.bf16.mxu0 0
        %2822 = vmatpush2.bf16.msra.mxu0 0
        %2823 = vmatprep.subr.bf16.mxu0 0
        %2824 = vmatpush2.bf16.msra.mxu0 0
        %2825 = vmatprep.subr.bf16.mxu0 0
        %2826 = vmatpush2.bf16.msra.mxu0 0
        %2827 = vmatprep.subr.bf16.mxu0 0
        %2828 = vmatpush2.bf16.msra.mxu0 0
        %2829 = vmatprep.subr.bf16.mxu0 0
        %2830 = vmatpush2.bf16.msra.mxu0 0
        %2831 = vmatprep.subr.bf16.mxu0 0
        %2832 = vmatpush2.bf16.msra.mxu0 0
        %2833 = vmatprep.mubr.bf16.mxu0 0
        %2834 = vmatmul.mubr.bf16.gmra.mxu0 %v2735
        %v2835 = vpop.f32.mrf.mxu0
        %v2836 = vadd.f32 %v2752, %v2835
        %v2837 = vpop.f32.mrf.mxu0
        %v2838 = vpop.f32.mrf.mxu0
        %v2839 = vpop.f32.mrf.mxu0
        %2840 = vdwg.mxu0
        %v2841 = vmax.f32 %v2836, 0.0
        %v2842 = vpack.c.bf16 %v2841, %v2841
        %v2843 = vld [vmem:[%s11] sm:$0xf]
        %v2844 = vld [vmem:[%s11 + $0x4] sm:$0xf]
        %v2845 = vld [vmem:[%s11 + $0x8] sm:$0xf]
        %v2846 = vld [vmem:[%s11 + $0xc] sm:$0xf]
        %v2847 = vld [vmem:[%s11 + $0x10] sm:$0xf]
        %v2848 = vld [vmem:[%s11 + $0x14] sm:$0xf]
        %v2849 = vld [vmem:[%s11 + $0x18] sm:$0xf]
        %v2850 = vld [vmem:[%s11 + $0x1c] sm:$0xf]
        %v2851 = vld [vmem:[%s11 + $0x20] sm:$0xf]
        %v2852 = vld [vmem:[%s11 + $0x24] sm:$0xf]
        %v2853 = vld [vmem:[%s11 + $0x28] sm:$0xf]
        %v2854 = vld [vmem:[%s11 + $0x2c] sm:$0xf]
        %v2855 = vld [vmem:[%s11 + $0x30] sm:$0xf]
        %v2856 = vld [vmem:[%s11 + $0x34] sm:$0xf]
        %v2857 = vld [vmem:[%s11 + $0x38] sm:$0xf]
        %v2858 = vld [vmem:[%s11 + $0x3c] sm:$0xf]
        %v2859 = vld [vmem:[#allocation11] sm:$0x1]
        %v2876 = vunpack.c.l.b16 %v2843
        %v2877 = vunpack.c.l.b16 %v2844
        %v2878 = vunpack.c.l.b16 %v2845
        %v2879 = vunpack.c.l.b16 %v2846
        %v2880 = vunpack.c.l.b16 %v2847
        %v2881 = vunpack.c.l.b16 %v2848
        %v2882 = vunpack.c.l.b16 %v2849
        %v2883 = vunpack.c.l.b16 %v2850
        %v2884 = vunpack.c.l.b16 %v2851
        %v2885 = vunpack.c.l.b16 %v2852
        %v2886 = vunpack.c.l.b16 %v2853
        %v2887 = vunpack.c.l.b16 %v2854
        %v2888 = vunpack.c.l.b16 %v2855
        %v2889 = vunpack.c.l.b16 %v2856
        %v2890 = vunpack.c.l.b16 %v2857
        %v2891 = vunpack.c.l.b16 %v2858
        %v2892 = vpack.c.b16 %v2877, %v2876
        %v2893 = vpack.c.b16 %v2879, %v2878
        %v2894 = vpack.c.b16 %v2881, %v2880
        %v2895 = vpack.c.b16 %v2883, %v2882
        %v2896 = vpack.c.b16 %v2885, %v2884
        %v2897 = vpack.c.b16 %v2887, %v2886
        %v2898 = vpack.c.b16 %v2889, %v2888
        %v2899 = vpack.c.b16 %v2891, %v2890
        %2908 = vmatprep.subr.bf16.mxu0 0
        %2909 = vmatpush1.bf16.msra.mxu0 %v2899
        %2910 = vmatprep.subr.bf16.mxu0 0
        %2911 = vmatpush1.bf16.msra.mxu0 %v2898
        %2912 = vmatprep.subr.bf16.mxu0 0
        %2913 = vmatpush1.bf16.msra.mxu0 %v2897
        %2914 = vmatprep.subr.bf16.mxu0 0
        %2915 = vmatpush1.bf16.msra.mxu0 %v2896
        %2916 = vmatprep.subr.bf16.mxu0 0
        %2917 = vmatpush1.bf16.msra.mxu0 %v2895
        %2918 = vmatprep.subr.bf16.mxu0 0
        %2919 = vmatpush1.bf16.msra.mxu0 %v2894
        %2920 = vmatprep.subr.bf16.mxu0 0
        %2921 = vmatpush1.bf16.msra.mxu0 %v2893
        %2922 = vmatprep.subr.bf16.mxu0 0
        %2923 = vmatpush1.bf16.msra.mxu0 %v2892
        %2924 = vmatprep.subr.bf16.mxu0 0
        %2925 = vmatpush2.bf16.msra.mxu0 0
        %2926 = vmatprep.subr.bf16.mxu0 0
        %2927 = vmatpush2.bf16.msra.mxu0 0
        %2928 = vmatprep.subr.bf16.mxu0 0
        %2929 = vmatpush2.bf16.msra.mxu0 0
        %2930 = vmatprep.subr.bf16.mxu0 0
        %2931 = vmatpush2.bf16.msra.mxu0 0
        %2932 = vmatprep.subr.bf16.mxu0 0
        %2933 = vmatpush2.bf16.msra.mxu0 0
        %2934 = vmatprep.subr.bf16.mxu0 0
        %2935 = vmatpush2.bf16.msra.mxu0 0
        %2936 = vmatprep.subr.bf16.mxu0 0
        %2937 = vmatpush2.bf16.msra.mxu0 0
        %2938 = vmatprep.subr.bf16.mxu0 0
        %2939 = vmatpush2.bf16.msra.mxu0 0
        %2940 = vmatprep.mubr.bf16.mxu0 0
        %2941 = vmatmul.mubr.bf16.gmra.mxu0 %v2842
        %v2942 = vpop.f32.mrf.mxu0
        %v2943 = vadd.f32 %v2859, %v2942
        %v2944 = vpop.f32.mrf.mxu0
        %v2945 = vpop.f32.mrf.mxu0
        %v2946 = vpop.f32.mrf.mxu0
        %2947 = vdwg.mxu0
        %2948 = vst [vmem:[%s512] sm:$0x1] %v2943
        %s2949 = sand.u32 %s317, 1
        %s2950 = scalar_lea.sflag [#allocation4], %s2949
        %s2951 = sand.u32 %s317, 1
        %s2952 = scalar_lea.vmem [#allocation13], %s2951
        // Predicated region
        $region97: #{lenet5_forward.1} parent=71 // pred_check
          %p2953 = pneg %p327
        $region98: #{lenet5_forward.1} parent=71 // pred_check_branch
          %2955 = sbr.rel (%p2953) target = $region100
        $region99: #{lenet5_forward.1} parent=71 // pred_region
          %s2957 = ssub.s32 16, 16
          %2958 = vsyncadd %s2950, %s2957
          %s2959 = smul.addr %s31, 16
          %s2960 = scalar_lea.hbm %s13, %s2959
          %s2962 = sshll.u32 %s2952, 4
          %s2963 = int_to_ptr.vmem [resolvable:$true] %s2962
          %2965 = dma.vmem_to_hbm [thread:$0]  %s2963, 16, %s2960, %s2950
        $region100: #{lenet5_forward.1} parent=71 // pred_fallthru
          _
      $region72: #{lenet5_forward.1} parent=5 // pred_fallthru
        _
      %p2966 = scmp.le.s32.totalorder 2, %s26
      // Predicated region
      $region101: #{lenet5_forward.1} parent=5 // pred_check
        %p2967 = pneg %p2966
      $region102: #{lenet5_forward.1} parent=5 // pred_check_branch
        %2969 = sbr.rel (%p2967) target = $region104
      $region103: #{lenet5_forward.1} parent=5 // pred_region
        %s2970 = ssub.s32 %s26, 2
        // Predicated region
        $region105: #{lenet5_forward.1} parent=103 // pred_check
          %p2971 = pneg %p333
        $region106: #{lenet5_forward.1} parent=103 // pred_check_branch
          %2973 = sbr.rel (%p2971) target = $region108
        $region107: #{lenet5_forward.1} parent=103 // pred_region
          %s2974 = sand.u32 %s318, 1
          %s2975 = scalar_lea.sflag [#allocation4], %s2974
          %s2976 = sand.u32 %s318, 1
          %s2977 = scalar_lea.vmem [#allocation13], %s2976
          %2978 = dma.done %s2975, 16
        $region108: #{lenet5_forward.1} parent=103 // pred_fallthru
          _
      $region104: #{lenet5_forward.1} parent=5 // pred_fallthru
        _
    $region6: #{lenet5_forward.1} parent=1 // loop_footer
      %s30 = sadd.s32 1, %s26
    $region7: #{lenet5_forward.1} parent=1 // loop_footer_branch
      %25 = sbr.rel target = $region3
    $region8: #{lenet5_forward.1} parent=1 // loop_exit
      _
    %2979 = vsyncpa [#allocation3], 1
    %s2980 = scalar_lea.sflag [#allocation3], 1
    %2981 = vsyncpa %s2980, 1
    %2982 = vsyncpa [#allocation6], 1
    %2983 = vsyncpa [#allocation9], 1
    %2984 = vsyncpa [#allocation12], 1
    %2985 = vsyncpa [#allocation4], 1
    %s2986 = scalar_lea.sflag [#allocation4], 1
    %2987 = vsyncpa %s2986, 1

</llo_original>
